<compile_context>
chip_gen: v6e
topology: v6e:2x2x1
jax: 0.10.0
libtpu: 0.0.40
codegen_flags: <defaults>
</compile_context>

<pallas_src>
import functools

import jax
import jax.numpy as jnp
import numpy as np
from jax.experimental import pallas as pl
from jax.experimental.pallas import tpu as pltpu


# ----------------------------------------------------------------------------
# Pallas kernel: one-hot token->gate-table MXU gather, fused-gate GRU
# recurrence, final linear + sigmoid.
# ----------------------------------------------------------------------------
def _gru_identifier_kernel(ids_ref, mask_ref, pp_ref, out_ref, *, T, Bp, H, C, Vp):
    # ids_ref:  (T*Bp, 1)  int32 time-major token ids (pad rows use id 0)
    # mask_ref: (T*Bp, H)  f32 validity mask, pre-broadcast to hidden width
    # pp_ref:   (Vp+H+8, 128) f32 packed constants:
    #             rows [0,Vp)       lanes [0,3H)      : emb @ W_ih_fused + bias
    #             rows [Vp,Vp+H)    lanes [0,3H)      : W_hh_fused (r|z|n)
    #             rows [Vp,Vp+H)    lanes [3H,3H+C)   : W_out
    #             row  Vp+H         lanes [0,H)       : b_hh_n
    #             row  Vp+H         lanes [H,2H)      : h0
    #             row  Vp+H         lanes [2H,2H+C)   : b_out
    # out_ref:  (Bp, C)    sigmoid(logits); pad rows sliced off in the wrapper
    TB = T * Bp
    H2, H3 = 2 * H, 3 * H

    # ---- hoisted prologue (runs once, off the recurrent dependence chain) ----
    # One-hot encode all tokens and push them through the fused
    # (embedding @ W_ih + input-side bias) table in a single MXU matmul:
    # gi_all[row] == table[token_id[row]]  (exact 0/1 selection).
    ids = ids_ref[...]                                                  # (TB, 1)
    lane = jax.lax.broadcasted_iota(jnp.int32, (TB, Vp), 1)
    onehot = (ids == lane).astype(jnp.float32)                          # (TB, Vp)
    gi_all = jnp.dot(onehot, pp_ref[0:Vp, :],
                     preferred_element_type=jnp.float32)                # (TB, 128)

    whh = pp_ref[Vp:Vp + H, 0:H3]                                       # (H, 3H)
    wout = pp_ref[Vp:Vp + H, H3:H3 + C]                                 # (H, C)
    b_hn = pp_ref[Vp + H:Vp + H + 1, 0:H]                               # (1, H)
    h0 = pp_ref[Vp + H:Vp + H + 1, H:H2]                                # (1, H)
    bout = pp_ref[Vp + H:Vp + H + 1, H2:H2 + C]                         # (1, C)
    mask = mask_ref[...]                                                # (TB, H)

    h = jnp.broadcast_to(h0, (Bp, H))

    # ---- serial recurrence: static T steps, fully unrolled, 1 MXU push/step
    for t in range(T):
        r0 = t * Bp                                     # sublane-aligned offset
        gh = jnp.dot(h, whh, preferred_element_type=jnp.float32)        # (Bp, 3H)

        # fused r/z: one 2H-wide sigmoid instead of two H-wide ones.
        rz = jax.nn.sigmoid(gi_all[r0:r0 + Bp, 0:H2] + gh[:, 0:H2])
        r = rz[:, 0:H]
        z = rz[:, H:H2]
        # PyTorch GRU: n = tanh(W_in x + b_in + r * (W_hn h + b_hn))
        n = jnp.tanh(gi_all[r0:r0 + Bp, H2:H3] + r * (gh[:, H2:H3] + b_hn))
        h_new = n + z * (h - n)                         # == (1 - z) * n + z * h

        # packed-sequence semantics via arithmetic lerp: rows past their
        # length keep their final state (== gather(recurrent_out, lengths-1)).
        m = mask[r0:r0 + Bp, :]
        h = h + m * (h_new - h)

    logits = jnp.dot(h, wout, preferred_element_type=jnp.float32) + bout
    out_ref[...] = jax.nn.sigmoid(logits)


# ----------------------------------------------------------------------------
# One-time parameter packing (NOT in the per-call path)
# ----------------------------------------------------------------------------
def pack_params(p):
    emb = p["embedding"].astype(jnp.float32)                    # (V, E)
    V = emb.shape[0]
    H = p["h0"].shape[-1]
    C = p["w_out"].shape[-1]
    Vp = 128
    assert V <= Vp, "one-hot embedding fusion assumes vocab_size <= 128"
    assert 3 * H + C <= 128 and 2 * H + C <= 128

    # fuse gates along lanes (torch.nn.GRU gate order r, z, n)
    w_ih = jnp.concatenate([p["w_ih"][0], p["w_ih"][1], p["w_ih"][2]], axis=-1)
    w_hh = jnp.concatenate([p["w_hh"][0], p["w_hh"][1], p["w_hh"][2]], axis=-1)
    b_in = jnp.concatenate([p["b_ih"][0] + p["b_hh"][0],
                            p["b_ih"][1] + p["b_hh"][1],
                            p["b_ih"][2]], axis=-1)             # (1, 3H)
    b_hn = p["b_hh"][2]                                         # (1, H)

    # fold embedding + input projection + input-side bias into a token table
    # (dropout is identity in eval mode, so this fusion is exact).
    table = emb @ w_ih + b_in                                   # (V, 3H)

    pp = jnp.zeros((Vp + H + 8, 128), jnp.float32)
    pp = pp.at[:V, :3 * H].set(table)
    pp = pp.at[Vp:Vp + H, :3 * H].set(w_hh)
    pp = pp.at[Vp:Vp + H, 3 * H:3 * H + C].set(p["w_out"])
    pp = pp.at[Vp + H, :H].set(b_hn[0])
    pp = pp.at[Vp + H, H:2 * H].set(p["h0"][0])
    pp = pp.at[Vp + H, 2 * H:2 * H + C].set(p["b_out"][0])
    return pp


# ----------------------------------------------------------------------------
# Forward wrapper (only tiny int/mask plumbing remains outside the kernel)
# ----------------------------------------------------------------------------
def _gru_identifier_forward(sentence, lengths, params_pack, hidden_dim, n_classes):
    B, T = sentence.shape
    H, C = hidden_dim, n_classes
    Bp = max(8, ((B + 7) // 8) * 8)       # pad batch to sublane multiple
    Vp = 128

    # TODO(synk): nn.Dropout treated as identity (eval-mode semantics).
    sent_p = jnp.pad(sentence.astype(jnp.int32), ((0, Bp - B), (0, 0)))
    len_p = jnp.pad(lengths.astype(jnp.int32), (0, Bp - B))

    ids = jnp.transpose(sent_p, (1, 0)).reshape(T * Bp, 1)      # time-major ids

    # validity mask pre-broadcast to hidden width: 1.0 where t < lengths[b]
    t_idx = jnp.arange(T, dtype=jnp.int32)[:, None]             # (T, 1)
    valid = (t_idx < len_p[None, :]).astype(jnp.float32)        # (T, Bp)
    mask = jnp.broadcast_to(valid[:, :, None], (T, Bp, H)).reshape(T * Bp, H)

    kernel = functools.partial(_gru_identifier_kernel,
                               T=T, Bp=Bp, H=H, C=C, Vp=Vp)

    flops = (2 * T * Bp * Vp * 128            # one-hot x gate-table
             + T * 2 * Bp * H * 3 * H         # recurrence h @ W_hh
             + 2 * Bp * H * C                 # output projection
             + 12 * T * Bp * H)               # elementwise gate math
    transcendentals = T * Bp * 3 * H + Bp * C
    bytes_accessed = 4 * (ids.size + mask.size + params_pack.size + Bp * C)

    vmem = pltpu.MemorySpace.VMEM
    out = pl.pallas_call(
        kernel,
        out_shape=jax.ShapeDtypeStruct((Bp, C), jnp.float32),
        in_specs=[pl.BlockSpec(memory_space=vmem)] * 3,
        out_specs=pl.BlockSpec(memory_space=vmem),
        cost_estimate=pl.CostEstimate(flops=flops,
                                      transcendentals=transcendentals,
                                      bytes_accessed=bytes_accessed),
    )(ids, mask, params_pack)
    return out[:B]


gru_identifier_forward = jax.jit(_gru_identifier_forward, static_argnums=(3, 4))


# ----------------------------------------------------------------------------
# Deterministic parameter construction (shapes from GRUIdentifier.__init__)
# ----------------------------------------------------------------------------
def init_params(key, vocab_size, n_classes, embedding_dim, hidden_dim):
    E, H, C = embedding_dim, hidden_dim, n_classes
    ks = jax.random.split(key, 8)
    return {
        "embedding": jax.random.normal(ks[0], (vocab_size, E), jnp.float32),
        "w_ih": jax.random.normal(ks[1], (3, E, H), jnp.float32) / np.sqrt(E),
        "w_hh": jax.random.normal(ks[2], (3, H, H), jnp.float32) / np.sqrt(H),
        "b_ih": jax.random.normal(ks[3], (3, 1, H), jnp.float32) * 0.1,
        "b_hh": jax.random.normal(ks[4], (3, 1, H), jnp.float32) * 0.1,
        # h_0_init: xavier-normal-ish deterministic init, shape (1, H)
        "h0": jax.random.normal(ks[5], (1, H), jnp.float32) / np.sqrt(H),
        "w_out": jax.random.normal(ks[6], (H, C), jnp.float32) / np.sqrt(H),
        "b_out": jax.random.normal(ks[7], (1, C), jnp.float32) * 0.1,
    }


# ----------------------------------------------------------------------------
# Pure-JAX reference of the same semantics (correctness check)
# ----------------------------------------------------------------------------
def reference_forward(sentence, lengths, p):
    x = jnp.take(p["embedding"], sentence, axis=0).astype(jnp.float32)
    B, T, _ = x.shape
    H = p["h0"].shape[-1]
    h = jnp.broadcast_to(p["h0"], (B, H))
    for t in range(T):
        x_t = x[:, t, :]
        gi = [x_t @ p["w_ih"][g] + p["b_ih"][g] for g in range(3)]
        gh = [h @ p["w_hh"][g] + p["b_hh"][g] for g in range(3)]
        r = jax.nn.sigmoid(gi[0] + gh[0])
        z = jax.nn.sigmoid(gi[1] + gh[1])
        n = jnp.tanh(gi[2] + r * gh[2])
        h_new = (1.0 - z) * n + z * h
        valid = (t < lengths)[:, None]
        h = jnp.where(valid, h_new, h)
    return jax.nn.sigmoid(h @ p["w_out"] + p["b_out"])


if __name__ == "__main__":
    VOCAB, N_CLASSES, EMB, HID = 50, 4, 32, 32
    B, T = 2, 8

    key = jax.random.PRNGKey(0)
    k_param, k_sent = jax.random.split(key)
    params = init_params(k_param, VOCAB, N_CLASSES, EMB, HID)
    params_pack = pack_params(params)     # one-time fusion/packing (not per call)

    sentence = jax.random.randint(k_sent, (B, T), 0, VOCAB, dtype=jnp.int32)
    lengths = jnp.array([8, 5], dtype=jnp.int32)  # sorted desc (pack_padded req.)

    out = gru_identifier_forward(sentence, lengths, params_pack, HID, N_CLASSES)
    out = jax.block_until_ready(out)

    ref = reference_forward(sentence, lengths, params)
    np.testing.assert_allclose(np.asarray(out), np.asarray(ref),
                               rtol=1e-5, atol=1e-5)

    print("KERNEL_OK")
</pallas_src>

<mosaic_0001>
module attributes {stable_mosaic.version = 11 : i64} {
  func.func @_gru_identifier_kernel(%arg0: memref<64x1xi32, #tpu.memory_space<vmem>>, %arg1: memref<64x32xf32, #tpu.memory_space<vmem>>, %arg2: memref<168x128xf32, #tpu.memory_space<vmem>>, %arg3: memref<8x4xf32, #tpu.memory_space<vmem>>) attributes {dimension_semantics = [], scalar_prefetch = 0 : i64, scratch_operands = 0 : i64, tpu.core_type = #tpu.core_type<tc>} {
    %c0 = arith.constant 0 : index
    %c0_0 = arith.constant 0 : index
    %0 = vector.load %arg0[%c0, %c0_0] : memref<64x1xi32, #tpu.memory_space<vmem>>, vector<64x1xi32>
    %1 = tpu.iota {dimensions = array<i32: 1>} : vector<64x128xi32>
    %2 = vector.broadcast %0 : vector<64x1xi32> to vector<64x128xi32>
    %3 = arith.cmpi eq, %2, %1 : vector<64x128xi32>
    %4 = arith.extui %3 : vector<64x128xi1> to vector<64x128xi32>
    %5 = arith.sitofp %4 : vector<64x128xi32> to vector<64x128xf32>
    %c0_1 = arith.constant 0 : index
    %c0_2 = arith.constant 0 : index
    %6 = vector.load %arg2[%c0_1, %c0_2] : memref<168x128xf32, #tpu.memory_space<vmem>>, vector<128x128xf32>
    %cst = arith.constant dense<0.000000e+00> : vector<64x128xf32>
    %7 = tpu.matmul %5, %6, %cst {dimension_numbers = #tpu.dot_dimension_numbers<[1], [0], [0], [1], [0, 0, 1, 1], [], []>} : vector<64x128xf32>, vector<128x128xf32>, vector<64x128xf32> -> vector<64x128xf32>
    %c128 = arith.constant 128 : index
    %c0_3 = arith.constant 0 : index
    %8 = vector.load %arg2[%c128, %c0_3] : memref<168x128xf32, #tpu.memory_space<vmem>>, vector<32x96xf32>
    %c128_4 = arith.constant 128 : index
    %c96 = arith.constant 96 : index
    %9 = vector.load %arg2[%c128_4, %c96] : memref<168x128xf32, #tpu.memory_space<vmem>>, vector<32x4xf32>
    %c160 = arith.constant 160 : index
    %c0_5 = arith.constant 0 : index
    %10 = vector.load %arg2[%c160, %c0_5] : memref<168x128xf32, #tpu.memory_space<vmem>>, vector<1x32xf32>
    %c160_6 = arith.constant 160 : index
    %c32 = arith.constant 32 : index
    %11 = vector.load %arg2[%c160_6, %c32] : memref<168x128xf32, #tpu.memory_space<vmem>>, vector<1x32xf32>
    %c160_7 = arith.constant 160 : index
    %c64 = arith.constant 64 : index
    %12 = vector.load %arg2[%c160_7, %c64] : memref<168x128xf32, #tpu.memory_space<vmem>>, vector<1x4xf32>
    %c0_8 = arith.constant 0 : index
    %c0_9 = arith.constant 0 : index
    %13 = vector.load %arg1[%c0_8, %c0_9] : memref<64x32xf32, #tpu.memory_space<vmem>>, vector<64x32xf32>
    %14 = vector.shape_cast %11 : vector<1x32xf32> to vector<1x32xf32>
    %15 = vector.broadcast %14 : vector<1x32xf32> to vector<8x32xf32>
    %cst_10 = arith.constant dense<0.000000e+00> : vector<8x96xf32>
    %16 = tpu.matmul %15, %8, %cst_10 {dimension_numbers = #tpu.dot_dimension_numbers<[1], [0], [0], [1], [0, 0, 1, 1], [], []>} : vector<8x32xf32>, vector<32x96xf32>, vector<8x96xf32> -> vector<8x96xf32>
    %17 = vector.extract_strided_slice %7 {offsets = [0, 0], sizes = [8, 64], strides = [1, 1]} : vector<64x128xf32> to vector<8x64xf32>
    %18 = vector.extract_strided_slice %16 {offsets = [0, 0], sizes = [8, 64], strides = [1, 1]} : vector<8x96xf32> to vector<8x64xf32>
    %19 = arith.addf %17, %18 : vector<8x64xf32>
    %20 = arith.negf %19 : vector<8x64xf32>
    %21 = math.exp %20 : vector<8x64xf32>
    %cst_11 = arith.constant 1.000000e+00 : f32
    %22 = vector.broadcast %cst_11 : f32 to vector<8x64xf32>
    %23 = arith.addf %22, %21 : vector<8x64xf32>
    %24 = arith.divf %22, %23 : vector<8x64xf32>
    %25 = vector.extract_strided_slice %24 {offsets = [0, 0], sizes = [8, 32], strides = [1, 1]} : vector<8x64xf32> to vector<8x32xf32>
    %26 = vector.extract_strided_slice %24 {offsets = [0, 32], sizes = [8, 32], strides = [1, 1]} : vector<8x64xf32> to vector<8x32xf32>
    %27 = vector.extract_strided_slice %7 {offsets = [0, 64], sizes = [8, 32], strides = [1, 1]} : vector<64x128xf32> to vector<8x32xf32>
    %28 = vector.extract_strided_slice %16 {offsets = [0, 64], sizes = [8, 32], strides = [1, 1]} : vector<8x96xf32> to vector<8x32xf32>
    %29 = vector.broadcast %10 : vector<1x32xf32> to vector<8x32xf32>
    %30 = arith.addf %28, %29 : vector<8x32xf32>
    %31 = arith.mulf %25, %30 : vector<8x32xf32>
    %32 = arith.addf %27, %31 : vector<8x32xf32>
    %33 = math.tanh %32 : vector<8x32xf32>
    %34 = arith.subf %15, %33 : vector<8x32xf32>
    %35 = arith.mulf %26, %34 : vector<8x32xf32>
    %36 = arith.addf %33, %35 : vector<8x32xf32>
    %37 = vector.extract_strided_slice %13 {offsets = [0, 0], sizes = [8, 32], strides = [1, 1]} : vector<64x32xf32> to vector<8x32xf32>
    %38 = arith.subf %36, %15 : vector<8x32xf32>
    %39 = arith.mulf %37, %38 : vector<8x32xf32>
    %40 = arith.addf %15, %39 : vector<8x32xf32>
    %cst_12 = arith.constant dense<0.000000e+00> : vector<8x96xf32>
    %41 = tpu.matmul %40, %8, %cst_12 {dimension_numbers = #tpu.dot_dimension_numbers<[1], [0], [0], [1], [0, 0, 1, 1], [], []>} : vector<8x32xf32>, vector<32x96xf32>, vector<8x96xf32> -> vector<8x96xf32>
    %42 = vector.extract_strided_slice %7 {offsets = [8, 0], sizes = [8, 64], strides = [1, 1]} : vector<64x128xf32> to vector<8x64xf32>
    %43 = vector.extract_strided_slice %41 {offsets = [0, 0], sizes = [8, 64], strides = [1, 1]} : vector<8x96xf32> to vector<8x64xf32>
    %44 = arith.addf %42, %43 : vector<8x64xf32>
    %45 = arith.negf %44 : vector<8x64xf32>
    %46 = math.exp %45 : vector<8x64xf32>
    %cst_13 = arith.constant 1.000000e+00 : f32
    %47 = vector.broadcast %cst_13 : f32 to vector<8x64xf32>
    %48 = arith.addf %47, %46 : vector<8x64xf32>
    %49 = arith.divf %47, %48 : vector<8x64xf32>
    %50 = vector.extract_strided_slice %49 {offsets = [0, 0], sizes = [8, 32], strides = [1, 1]} : vector<8x64xf32> to vector<8x32xf32>
    %51 = vector.extract_strided_slice %49 {offsets = [0, 32], sizes = [8, 32], strides = [1, 1]} : vector<8x64xf32> to vector<8x32xf32>
    %52 = vector.extract_strided_slice %7 {offsets = [8, 64], sizes = [8, 32], strides = [1, 1]} : vector<64x128xf32> to vector<8x32xf32>
    %53 = vector.extract_strided_slice %41 {offsets = [0, 64], sizes = [8, 32], strides = [1, 1]} : vector<8x96xf32> to vector<8x32xf32>
    %54 = vector.broadcast %10 : vector<1x32xf32> to vector<8x32xf32>
    %55 = arith.addf %53, %54 : vector<8x32xf32>
    %56 = arith.mulf %50, %55 : vector<8x32xf32>
    %57 = arith.addf %52, %56 : vector<8x32xf32>
    %58 = math.tanh %57 : vector<8x32xf32>
    %59 = arith.subf %40, %58 : vector<8x32xf32>
    %60 = arith.mulf %51, %59 : vector<8x32xf32>
    %61 = arith.addf %58, %60 : vector<8x32xf32>
    %62 = vector.extract_strided_slice %13 {offsets = [8, 0], sizes = [8, 32], strides = [1, 1]} : vector<64x32xf32> to vector<8x32xf32>
    %63 = arith.subf %61, %40 : vector<8x32xf32>
    %64 = arith.mulf %62, %63 : vector<8x32xf32>
    %65 = arith.addf %40, %64 : vector<8x32xf32>
    %cst_14 = arith.constant dense<0.000000e+00> : vector<8x96xf32>
    %66 = tpu.matmul %65, %8, %cst_14 {dimension_numbers = #tpu.dot_dimension_numbers<[1], [0], [0], [1], [0, 0, 1, 1], [], []>} : vector<8x32xf32>, vector<32x96xf32>, vector<8x96xf32> -> vector<8x96xf32>
    %67 = vector.extract_strided_slice %7 {offsets = [16, 0], sizes = [8, 64], strides = [1, 1]} : vector<64x128xf32> to vector<8x64xf32>
    %68 = vector.extract_strided_slice %66 {offsets = [0, 0], sizes = [8, 64], strides = [1, 1]} : vector<8x96xf32> to vector<8x64xf32>
    %69 = arith.addf %67, %68 : vector<8x64xf32>
    %70 = arith.negf %69 : vector<8x64xf32>
    %71 = math.exp %70 : vector<8x64xf32>
    %cst_15 = arith.constant 1.000000e+00 : f32
    %72 = vector.broadcast %cst_15 : f32 to vector<8x64xf32>
    %73 = arith.addf %72, %71 : vector<8x64xf32>
    %74 = arith.divf %72, %73 : vector<8x64xf32>
    %75 = vector.extract_strided_slice %74 {offsets = [0, 0], sizes = [8, 32], strides = [1, 1]} : vector<8x64xf32> to vector<8x32xf32>
    %76 = vector.extract_strided_slice %74 {offsets = [0, 32], sizes = [8, 32], strides = [1, 1]} : vector<8x64xf32> to vector<8x32xf32>
    %77 = vector.extract_strided_slice %7 {offsets = [16, 64], sizes = [8, 32], strides = [1, 1]} : vector<64x128xf32> to vector<8x32xf32>
    %78 = vector.extract_strided_slice %66 {offsets = [0, 64], sizes = [8, 32], strides = [1, 1]} : vector<8x96xf32> to vector<8x32xf32>
    %79 = vector.broadcast %10 : vector<1x32xf32> to vector<8x32xf32>
    %80 = arith.addf %78, %79 : vector<8x32xf32>
    %81 = arith.mulf %75, %80 : vector<8x32xf32>
    %82 = arith.addf %77, %81 : vector<8x32xf32>
    %83 = math.tanh %82 : vector<8x32xf32>
    %84 = arith.subf %65, %83 : vector<8x32xf32>
    %85 = arith.mulf %76, %84 : vector<8x32xf32>
    %86 = arith.addf %83, %85 : vector<8x32xf32>
    %87 = vector.extract_strided_slice %13 {offsets = [16, 0], sizes = [8, 32], strides = [1, 1]} : vector<64x32xf32> to vector<8x32xf32>
    %88 = arith.subf %86, %65 : vector<8x32xf32>
    %89 = arith.mulf %87, %88 : vector<8x32xf32>
    %90 = arith.addf %65, %89 : vector<8x32xf32>
    %cst_16 = arith.constant dense<0.000000e+00> : vector<8x96xf32>
    %91 = tpu.matmul %90, %8, %cst_16 {dimension_numbers = #tpu.dot_dimension_numbers<[1], [0], [0], [1], [0, 0, 1, 1], [], []>} : vector<8x32xf32>, vector<32x96xf32>, vector<8x96xf32> -> vector<8x96xf32>
    %92 = vector.extract_strided_slice %7 {offsets = [24, 0], sizes = [8, 64], strides = [1, 1]} : vector<64x128xf32> to vector<8x64xf32>
    %93 = vector.extract_strided_slice %91 {offsets = [0, 0], sizes = [8, 64], strides = [1, 1]} : vector<8x96xf32> to vector<8x64xf32>
    %94 = arith.addf %92, %93 : vector<8x64xf32>
    %95 = arith.negf %94 : vector<8x64xf32>
    %96 = math.exp %95 : vector<8x64xf32>
    %cst_17 = arith.constant 1.000000e+00 : f32
    %97 = vector.broadcast %cst_17 : f32 to vector<8x64xf32>
    %98 = arith.addf %97, %96 : vector<8x64xf32>
    %99 = arith.divf %97, %98 : vector<8x64xf32>
    %100 = vector.extract_strided_slice %99 {offsets = [0, 0], sizes = [8, 32], strides = [1, 1]} : vector<8x64xf32> to vector<8x32xf32>
    %101 = vector.extract_strided_slice %99 {offsets = [0, 32], sizes = [8, 32], strides = [1, 1]} : vector<8x64xf32> to vector<8x32xf32>
    %102 = vector.extract_strided_slice %7 {offsets = [24, 64], sizes = [8, 32], strides = [1, 1]} : vector<64x128xf32> to vector<8x32xf32>
    %103 = vector.extract_strided_slice %91 {offsets = [0, 64], sizes = [8, 32], strides = [1, 1]} : vector<8x96xf32> to vector<8x32xf32>
    %104 = vector.broadcast %10 : vector<1x32xf32> to vector<8x32xf32>
    %105 = arith.addf %103, %104 : vector<8x32xf32>
    %106 = arith.mulf %100, %105 : vector<8x32xf32>
    %107 = arith.addf %102, %106 : vector<8x32xf32>
    %108 = math.tanh %107 : vector<8x32xf32>
    %109 = arith.subf %90, %108 : vector<8x32xf32>
    %110 = arith.mulf %101, %109 : vector<8x32xf32>
    %111 = arith.addf %108, %110 : vector<8x32xf32>
    %112 = vector.extract_strided_slice %13 {offsets = [24, 0], sizes = [8, 32], strides = [1, 1]} : vector<64x32xf32> to vector<8x32xf32>
    %113 = arith.subf %111, %90 : vector<8x32xf32>
    %114 = arith.mulf %112, %113 : vector<8x32xf32>
    %115 = arith.addf %90, %114 : vector<8x32xf32>
    %cst_18 = arith.constant dense<0.000000e+00> : vector<8x96xf32>
    %116 = tpu.matmul %115, %8, %cst_18 {dimension_numbers = #tpu.dot_dimension_numbers<[1], [0], [0], [1], [0, 0, 1, 1], [], []>} : vector<8x32xf32>, vector<32x96xf32>, vector<8x96xf32> -> vector<8x96xf32>
    %117 = vector.extract_strided_slice %7 {offsets = [32, 0], sizes = [8, 64], strides = [1, 1]} : vector<64x128xf32> to vector<8x64xf32>
    %118 = vector.extract_strided_slice %116 {offsets = [0, 0], sizes = [8, 64], strides = [1, 1]} : vector<8x96xf32> to vector<8x64xf32>
    %119 = arith.addf %117, %118 : vector<8x64xf32>
    %120 = arith.negf %119 : vector<8x64xf32>
    %121 = math.exp %120 : vector<8x64xf32>
    %cst_19 = arith.constant 1.000000e+00 : f32
    %122 = vector.broadcast %cst_19 : f32 to vector<8x64xf32>
    %123 = arith.addf %122, %121 : vector<8x64xf32>
    %124 = arith.divf %122, %123 : vector<8x64xf32>
    %125 = vector.extract_strided_slice %124 {offsets = [0, 0], sizes = [8, 32], strides = [1, 1]} : vector<8x64xf32> to vector<8x32xf32>
    %126 = vector.extract_strided_slice %124 {offsets = [0, 32], sizes = [8, 32], strides = [1, 1]} : vector<8x64xf32> to vector<8x32xf32>
    %127 = vector.extract_strided_slice %7 {offsets = [32, 64], sizes = [8, 32], strides = [1, 1]} : vector<64x128xf32> to vector<8x32xf32>
    %128 = vector.extract_strided_slice %116 {offsets = [0, 64], sizes = [8, 32], strides = [1, 1]} : vector<8x96xf32> to vector<8x32xf32>
    %129 = vector.broadcast %10 : vector<1x32xf32> to vector<8x32xf32>
    %130 = arith.addf %128, %129 : vector<8x32xf32>
    %131 = arith.mulf %125, %130 : vector<8x32xf32>
    %132 = arith.addf %127, %131 : vector<8x32xf32>
    %133 = math.tanh %132 : vector<8x32xf32>
    %134 = arith.subf %115, %133 : vector<8x32xf32>
    %135 = arith.mulf %126, %134 : vector<8x32xf32>
    %136 = arith.addf %133, %135 : vector<8x32xf32>
    %137 = vector.extract_strided_slice %13 {offsets = [32, 0], sizes = [8, 32], strides = [1, 1]} : vector<64x32xf32> to vector<8x32xf32>
    %138 = arith.subf %136, %115 : vector<8x32xf32>
    %139 = arith.mulf %137, %138 : vector<8x32xf32>
    %140 = arith.addf %115, %139 : vector<8x32xf32>
    %cst_20 = arith.constant dense<0.000000e+00> : vector<8x96xf32>
    %141 = tpu.matmul %140, %8, %cst_20 {dimension_numbers = #tpu.dot_dimension_numbers<[1], [0], [0], [1], [0, 0, 1, 1], [], []>} : vector<8x32xf32>, vector<32x96xf32>, vector<8x96xf32> -> vector<8x96xf32>
    %142 = vector.extract_strided_slice %7 {offsets = [40, 0], sizes = [8, 64], strides = [1, 1]} : vector<64x128xf32> to vector<8x64xf32>
    %143 = vector.extract_strided_slice %141 {offsets = [0, 0], sizes = [8, 64], strides = [1, 1]} : vector<8x96xf32> to vector<8x64xf32>
    %144 = arith.addf %142, %143 : vector<8x64xf32>
    %145 = arith.negf %144 : vector<8x64xf32>
    %146 = math.exp %145 : vector<8x64xf32>
    %cst_21 = arith.constant 1.000000e+00 : f32
    %147 = vector.broadcast %cst_21 : f32 to vector<8x64xf32>
    %148 = arith.addf %147, %146 : vector<8x64xf32>
    %149 = arith.divf %147, %148 : vector<8x64xf32>
    %150 = vector.extract_strided_slice %149 {offsets = [0, 0], sizes = [8, 32], strides = [1, 1]} : vector<8x64xf32> to vector<8x32xf32>
    %151 = vector.extract_strided_slice %149 {offsets = [0, 32], sizes = [8, 32], strides = [1, 1]} : vector<8x64xf32> to vector<8x32xf32>
    %152 = vector.extract_strided_slice %7 {offsets = [40, 64], sizes = [8, 32], strides = [1, 1]} : vector<64x128xf32> to vector<8x32xf32>
    %153 = vector.extract_strided_slice %141 {offsets = [0, 64], sizes = [8, 32], strides = [1, 1]} : vector<8x96xf32> to vector<8x32xf32>
    %154 = vector.broadcast %10 : vector<1x32xf32> to vector<8x32xf32>
    %155 = arith.addf %153, %154 : vector<8x32xf32>
    %156 = arith.mulf %150, %155 : vector<8x32xf32>
    %157 = arith.addf %152, %156 : vector<8x32xf32>
    %158 = math.tanh %157 : vector<8x32xf32>
    %159 = arith.subf %140, %158 : vector<8x32xf32>
    %160 = arith.mulf %151, %159 : vector<8x32xf32>
    %161 = arith.addf %158, %160 : vector<8x32xf32>
    %162 = vector.extract_strided_slice %13 {offsets = [40, 0], sizes = [8, 32], strides = [1, 1]} : vector<64x32xf32> to vector<8x32xf32>
    %163 = arith.subf %161, %140 : vector<8x32xf32>
    %164 = arith.mulf %162, %163 : vector<8x32xf32>
    %165 = arith.addf %140, %164 : vector<8x32xf32>
    %cst_22 = arith.constant dense<0.000000e+00> : vector<8x96xf32>
    %166 = tpu.matmul %165, %8, %cst_22 {dimension_numbers = #tpu.dot_dimension_numbers<[1], [0], [0], [1], [0, 0, 1, 1], [], []>} : vector<8x32xf32>, vector<32x96xf32>, vector<8x96xf32> -> vector<8x96xf32>
    %167 = vector.extract_strided_slice %7 {offsets = [48, 0], sizes = [8, 64], strides = [1, 1]} : vector<64x128xf32> to vector<8x64xf32>
    %168 = vector.extract_strided_slice %166 {offsets = [0, 0], sizes = [8, 64], strides = [1, 1]} : vector<8x96xf32> to vector<8x64xf32>
    %169 = arith.addf %167, %168 : vector<8x64xf32>
    %170 = arith.negf %169 : vector<8x64xf32>
    %171 = math.exp %170 : vector<8x64xf32>
    %cst_23 = arith.constant 1.000000e+00 : f32
    %172 = vector.broadcast %cst_23 : f32 to vector<8x64xf32>
    %173 = arith.addf %172, %171 : vector<8x64xf32>
    %174 = arith.divf %172, %173 : vector<8x64xf32>
    %175 = vector.extract_strided_slice %174 {offsets = [0, 0], sizes = [8, 32], strides = [1, 1]} : vector<8x64xf32> to vector<8x32xf32>
    %176 = vector.extract_strided_slice %174 {offsets = [0, 32], sizes = [8, 32], strides = [1, 1]} : vector<8x64xf32> to vector<8x32xf32>
    %177 = vector.extract_strided_slice %7 {offsets = [48, 64], sizes = [8, 32], strides = [1, 1]} : vector<64x128xf32> to vector<8x32xf32>
    %178 = vector.extract_strided_slice %166 {offsets = [0, 64], sizes = [8, 32], strides = [1, 1]} : vector<8x96xf32> to vector<8x32xf32>
    %179 = vector.broadcast %10 : vector<1x32xf32> to vector<8x32xf32>
    %180 = arith.addf %178, %179 : vector<8x32xf32>
    %181 = arith.mulf %175, %180 : vector<8x32xf32>
    %182 = arith.addf %177, %181 : vector<8x32xf32>
    %183 = math.tanh %182 : vector<8x32xf32>
    %184 = arith.subf %165, %183 : vector<8x32xf32>
    %185 = arith.mulf %176, %184 : vector<8x32xf32>
    %186 = arith.addf %183, %185 : vector<8x32xf32>
    %187 = vector.extract_strided_slice %13 {offsets = [48, 0], sizes = [8, 32], strides = [1, 1]} : vector<64x32xf32> to vector<8x32xf32>
    %188 = arith.subf %186, %165 : vector<8x32xf32>
    %189 = arith.mulf %187, %188 : vector<8x32xf32>
    %190 = arith.addf %165, %189 : vector<8x32xf32>
    %cst_24 = arith.constant dense<0.000000e+00> : vector<8x96xf32>
    %191 = tpu.matmul %190, %8, %cst_24 {dimension_numbers = #tpu.dot_dimension_numbers<[1], [0], [0], [1], [0, 0, 1, 1], [], []>} : vector<8x32xf32>, vector<32x96xf32>, vector<8x96xf32> -> vector<8x96xf32>
    %192 = vector.extract_strided_slice %7 {offsets = [56, 0], sizes = [8, 64], strides = [1, 1]} : vector<64x128xf32> to vector<8x64xf32>
    %193 = vector.extract_strided_slice %191 {offsets = [0, 0], sizes = [8, 64], strides = [1, 1]} : vector<8x96xf32> to vector<8x64xf32>
    %194 = arith.addf %192, %193 : vector<8x64xf32>
    %195 = arith.negf %194 : vector<8x64xf32>
    %196 = math.exp %195 : vector<8x64xf32>
    %cst_25 = arith.constant 1.000000e+00 : f32
    %197 = vector.broadcast %cst_25 : f32 to vector<8x64xf32>
    %198 = arith.addf %197, %196 : vector<8x64xf32>
    %199 = arith.divf %197, %198 : vector<8x64xf32>
    %200 = vector.extract_strided_slice %199 {offsets = [0, 0], sizes = [8, 32], strides = [1, 1]} : vector<8x64xf32> to vector<8x32xf32>
    %201 = vector.extract_strided_slice %199 {offsets = [0, 32], sizes = [8, 32], strides = [1, 1]} : vector<8x64xf32> to vector<8x32xf32>
    %202 = vector.extract_strided_slice %7 {offsets = [56, 64], sizes = [8, 32], strides = [1, 1]} : vector<64x128xf32> to vector<8x32xf32>
    %203 = vector.extract_strided_slice %191 {offsets = [0, 64], sizes = [8, 32], strides = [1, 1]} : vector<8x96xf32> to vector<8x32xf32>
    %204 = vector.broadcast %10 : vector<1x32xf32> to vector<8x32xf32>
    %205 = arith.addf %203, %204 : vector<8x32xf32>
    %206 = arith.mulf %200, %205 : vector<8x32xf32>
    %207 = arith.addf %202, %206 : vector<8x32xf32>
    %208 = math.tanh %207 : vector<8x32xf32>
    %209 = arith.subf %190, %208 : vector<8x32xf32>
    %210 = arith.mulf %201, %209 : vector<8x32xf32>
    %211 = arith.addf %208, %210 : vector<8x32xf32>
    %212 = vector.extract_strided_slice %13 {offsets = [56, 0], sizes = [8, 32], strides = [1, 1]} : vector<64x32xf32> to vector<8x32xf32>
    %213 = arith.subf %211, %190 : vector<8x32xf32>
    %214 = arith.mulf %212, %213 : vector<8x32xf32>
    %215 = arith.addf %190, %214 : vector<8x32xf32>
    %cst_26 = arith.constant dense<0.000000e+00> : vector<8x4xf32>
    %216 = tpu.matmul %215, %9, %cst_26 {dimension_numbers = #tpu.dot_dimension_numbers<[1], [0], [0], [1], [0, 0, 1, 1], [], []>} : vector<8x32xf32>, vector<32x4xf32>, vector<8x4xf32> -> vector<8x4xf32>
    %217 = vector.broadcast %12 : vector<1x4xf32> to vector<8x4xf32>
    %218 = arith.addf %216, %217 : vector<8x4xf32>
    %219 = arith.negf %218 : vector<8x4xf32>
    %220 = math.exp %219 : vector<8x4xf32>
    %cst_27 = arith.constant 1.000000e+00 : f32
    %221 = vector.broadcast %cst_27 : f32 to vector<8x4xf32>
    %222 = arith.addf %221, %220 : vector<8x4xf32>
    %223 = arith.divf %221, %222 : vector<8x4xf32>
    %c0_28 = arith.constant 0 : index
    %c0_29 = arith.constant 0 : index
    %224 = vector.load %arg3[%c0_28, %c0_29] : memref<8x4xf32, #tpu.memory_space<vmem>>, vector<8x4xf32>
    tpu.vector_store %arg3[%c0_28, %c0_29], %223 {strides = array<i32>} : memref<8x4xf32, #tpu.memory_space<vmem>>, vector<8x4xf32>,
    return
  }
}

</mosaic_0001>

<llo_original>
// kernel: _gru_identifier_forward.1
$region0: #{_gru_identifier_forward.1}
  #allocation0 [shape = 'u32[]', space=smem, size = 0x4, offset = 0x4, fixed_abs, tag = 'smem constant byte address 0x4 - core index']
  #allocation1 [shape = 'u32[144,128]{1,0:T(1,128)}', space=vmem, size = 0x12000, scoped, tag = 'internal scratch']
  %s0 = inlined_call_operand.vmem [shape: s32[64,1], index: 0, kind: input, shape index: {}]
  %s1 = inlined_call_operand.vmem [shape: f32[64,32], index: 1, kind: input, shape index: {}]
  %s2 = inlined_call_operand.vmem [shape: f32[168,128], index: 2, kind: input, shape index: {}]
  %s3 = inlined_call_operand.vmem [shape: f32[8,4], index: 3, kind: output, shape index: {}]
  %s4 = sld [smem:[#allocation0]]
  $region22: #{_gru_identifier_forward.1} parent=0
    _
  %s6 = ssub.s32 1, %s4
  %s7 = scalar_select 0, %s6, %s4
  // Predicated region
  $region2: #{_gru_identifier_forward.1} parent=0 // pred_check
    _
  $region3: #{_gru_identifier_forward.1} parent=0 // pred_check_branch
    %9 = sbr.rel (0) target = $region5
  $region4: #{_gru_identifier_forward.1} parent=0 // pred_region
    _
  $region5: #{_gru_identifier_forward.1} parent=0 // pred_fallthru
    _
  // Predicated region
  $region6: #{_gru_identifier_forward.1} parent=0 // pred_check
    _
  $region7: #{_gru_identifier_forward.1} parent=0 // pred_check_branch
    %11 = sbr.rel (0) target = $region9
  $region8: #{_gru_identifier_forward.1} parent=0 // pred_region
    _
  $region9: #{_gru_identifier_forward.1} parent=0 // pred_fallthru
    _
  // Predicated region
  $region10: #{_gru_identifier_forward.1} parent=0 // pred_check
    _
  $region11: #{_gru_identifier_forward.1} parent=0 // pred_check_branch
    %13 = sbr.rel (0) target = $region13
  $region12: #{_gru_identifier_forward.1} parent=0 // pred_region
    _
  $region13: #{_gru_identifier_forward.1} parent=0 // pred_fallthru
    _
  %v14 = vld [vmem:[%s0] sm:$0xff]
  %v15 = vld [vmem:[%s0 + $0x8] sm:$0xff]
  %v16 = vld [vmem:[%s0 + $0x10] sm:$0xff]
  %v17 = vld [vmem:[%s0 + $0x18] sm:$0xff]
  %v18 = vld [vmem:[%s0 + $0x20] sm:$0xff]
  %v19 = vld [vmem:[%s0 + $0x28] sm:$0xff]
  %v20 = vld [vmem:[%s0 + $0x30] sm:$0xff]
  %v21 = vld [vmem:[%s0 + $0x38] sm:$0xff]
  %v22 = vlaneseq
  %v23 = vand.u32 %v22, 127
  %24 = vset.pattern.permute.xlu0 0
  %25 = vperm.xlu0 %24, %v14
  %v26 = vpop.permute.xlu0 %25
  %27 = vset.pattern.permute.xlu0 0
  %28 = vperm.xlu0 %27, %v15
  %v29 = vpop.permute.xlu0 %28
  %30 = vset.pattern.permute.xlu0 0
  %31 = vperm.xlu0 %30, %v16
  %v32 = vpop.permute.xlu0 %31
  %33 = vset.pattern.permute.xlu0 0
  %34 = vperm.xlu0 %33, %v17
  %v35 = vpop.permute.xlu0 %34
  %36 = vset.pattern.permute.xlu0 0
  %37 = vperm.xlu0 %36, %v18
  %v38 = vpop.permute.xlu0 %37
  %39 = vset.pattern.permute.xlu0 0
  %40 = vperm.xlu0 %39, %v19
  %v41 = vpop.permute.xlu0 %40
  %42 = vset.pattern.permute.xlu0 0
  %43 = vperm.xlu0 %42, %v20
  %v44 = vpop.permute.xlu0 %43
  %45 = vset.pattern.permute.xlu0 0
  %46 = vperm.xlu0 %45, %v21
  %v47 = vpop.permute.xlu0 %46
  %vm48 = vcmp.eq.s32.totalorder %v26, %v23
  %vm49 = vcmp.eq.s32.totalorder %v29, %v23
  %vm50 = vcmp.eq.s32.totalorder %v32, %v23
  %vm51 = vcmp.eq.s32.totalorder %v35, %v23
  %vm52 = vcmp.eq.s32.totalorder %v38, %v23
  %vm53 = vcmp.eq.s32.totalorder %v41, %v23
  %vm54 = vcmp.eq.s32.totalorder %v44, %v23
  %vm55 = vcmp.eq.s32.totalorder %v47, %v23
  %v56 = vsel %vm48, 1, 0
  %v57 = vsel %vm49, 1, 0
  %v58 = vsel %vm50, 1, 0
  %v59 = vsel %vm51, 1, 0
  %v60 = vsel %vm52, 1, 0
  %v61 = vsel %vm53, 1, 0
  %v62 = vsel %vm54, 1, 0
  %v63 = vsel %vm55, 1, 0
  %v64 = vcvt.s32.f32 %v56
  %v65 = vcvt.s32.f32 %v57
  %v66 = vcvt.s32.f32 %v58
  %v67 = vcvt.s32.f32 %v59
  %v68 = vcvt.s32.f32 %v60
  %v69 = vcvt.s32.f32 %v61
  %v70 = vcvt.s32.f32 %v62
  %v71 = vcvt.s32.f32 %v63
  %v72 = vld [vmem:[%s2] sm:$0xff]
  %v73 = vld [vmem:[%s2 + $0x8] sm:$0xff]
  %v74 = vld [vmem:[%s2 + $0x10] sm:$0xff]
  %v75 = vld [vmem:[%s2 + $0x18] sm:$0xff]
  %v76 = vld [vmem:[%s2 + $0x20] sm:$0xff]
  %v77 = vld [vmem:[%s2 + $0x28] sm:$0xff]
  %v78 = vld [vmem:[%s2 + $0x30] sm:$0xff]
  %v79 = vld [vmem:[%s2 + $0x38] sm:$0xff]
  %v80 = vld [vmem:[%s2 + $0x40] sm:$0xff]
  %v81 = vld [vmem:[%s2 + $0x48] sm:$0xff]
  %v82 = vld [vmem:[%s2 + $0x50] sm:$0xff]
  %v83 = vld [vmem:[%s2 + $0x58] sm:$0xff]
  %v84 = vld [vmem:[%s2 + $0x60] sm:$0xff]
  %v85 = vld [vmem:[%s2 + $0x68] sm:$0xff]
  %v86 = vld [vmem:[%s2 + $0x70] sm:$0xff]
  %v87 = vld [vmem:[%s2 + $0x78] sm:$0xff]
  %88 = vmatprep.subr.mxu0 0.0
  %89 = vmatpush1.msra.mxu0 %v87
  %90 = vmatprep.subr.mxu0 0.0
  %91 = vmatpush1.msra.mxu0 %v86
  %92 = vmatprep.subr.mxu0 0.0
  %93 = vmatpush1.msra.mxu0 %v85
  %94 = vmatprep.subr.mxu0 0.0
  %95 = vmatpush1.msra.mxu0 %v84
  %96 = vmatprep.subr.mxu0 0.0
  %97 = vmatpush1.msra.mxu0 %v83
  %98 = vmatprep.subr.mxu0 0.0
  %99 = vmatpush1.msra.mxu0 %v82
  %100 = vmatprep.subr.mxu0 0.0
  %101 = vmatpush1.msra.mxu0 %v81
  %102 = vmatprep.subr.mxu0 0.0
  %103 = vmatpush1.msra.mxu0 %v80
  %104 = vmatprep.subr.mxu0 0.0
  %105 = vmatpush1.msra.mxu0 %v79
  %106 = vmatprep.subr.mxu0 0.0
  %107 = vmatpush1.msra.mxu0 %v78
  %108 = vmatprep.subr.mxu0 0.0
  %109 = vmatpush1.msra.mxu0 %v77
  %110 = vmatprep.subr.mxu0 0.0
  %111 = vmatpush1.msra.mxu0 %v76
  %112 = vmatprep.subr.mxu0 0.0
  %113 = vmatpush1.msra.mxu0 %v75
  %114 = vmatprep.subr.mxu0 0.0
  %115 = vmatpush1.msra.mxu0 %v74
  %116 = vmatprep.subr.mxu0 0.0
  %117 = vmatpush1.msra.mxu0 %v73
  %118 = vmatprep.subr.mxu0 0.0
  %119 = vmatpush1.msra.mxu0 %v72
  %120 = vmatprep.subr.mxu0 0.0
  %121 = vmatpush2.msra.mxu0 0.0
  %122 = vmatprep.subr.mxu0 0.0
  %123 = vmatpush2.msra.mxu0 0.0
  %124 = vmatprep.subr.mxu0 0.0
  %125 = vmatpush2.msra.mxu0 0.0
  %126 = vmatprep.subr.mxu0 0.0
  %127 = vmatpush2.msra.mxu0 0.0
  %128 = vmatprep.subr.mxu0 0.0
  %129 = vmatpush2.msra.mxu0 0.0
  %130 = vmatprep.subr.mxu0 0.0
  %131 = vmatpush2.msra.mxu0 0.0
  %132 = vmatprep.subr.mxu0 0.0
  %133 = vmatpush2.msra.mxu0 0.0
  %134 = vmatprep.subr.mxu0 0.0
  %135 = vmatpush2.msra.mxu0 0.0
  %136 = vmatprep.subr.mxu0 0.0
  %137 = vmatpush2.msra.mxu0 0.0
  %138 = vmatprep.subr.mxu0 0.0
  %139 = vmatpush2.msra.mxu0 0.0
  %140 = vmatprep.subr.mxu0 0.0
  %141 = vmatpush2.msra.mxu0 0.0
  %142 = vmatprep.subr.mxu0 0.0
  %143 = vmatpush2.msra.mxu0 0.0
  %144 = vmatprep.subr.mxu0 0.0
  %145 = vmatpush2.msra.mxu0 0.0
  %146 = vmatprep.subr.mxu0 0.0
  %147 = vmatpush2.msra.mxu0 0.0
  %148 = vmatprep.subr.mxu0 0.0
  %149 = vmatpush2.msra.mxu0 0.0
  %150 = vmatprep.subr.mxu0 0.0
  %151 = vmatpush2.msra.mxu0 0.0
  %152 = vmatprep.mubr.f32.mxu0 0.0
  %153 = vmatmul.mubr.f32.gmra.mxu0 %v64
  %v154 = vpop.f32.mrf.mxu0
  %v155 = vadd.f32 0.0, %v154
  %v156 = vpop.f32.mrf.mxu0
  %157 = vmatprep.mubr.f32.mxu0 0.0
  %158 = vmatmul.mubr.f32.gmra.mxu0 %v65
  %v159 = vpop.f32.mrf.mxu0
  %v160 = vadd.f32 0.0, %v159
  %v161 = vpop.f32.mrf.mxu0
  %162 = vmatprep.mubr.f32.mxu0 0.0
  %163 = vmatmul.mubr.f32.gmra.mxu0 %v66
  %v164 = vpop.f32.mrf.mxu0
  %v165 = vadd.f32 0.0, %v164
  %v166 = vpop.f32.mrf.mxu0
  %167 = vmatprep.mubr.f32.mxu0 0.0
  %168 = vmatmul.mubr.f32.gmra.mxu0 %v67
  %v169 = vpop.f32.mrf.mxu0
  %v170 = vadd.f32 0.0, %v169
  %v171 = vpop.f32.mrf.mxu0
  %172 = vmatprep.mubr.f32.mxu0 0.0
  %173 = vmatmul.mubr.f32.gmra.mxu0 %v68
  %v174 = vpop.f32.mrf.mxu0
  %v175 = vadd.f32 0.0, %v174
  %v176 = vpop.f32.mrf.mxu0
  %177 = vmatprep.mubr.f32.mxu0 0.0
  %178 = vmatmul.mubr.f32.gmra.mxu0 %v69
  %v179 = vpop.f32.mrf.mxu0
  %v180 = vadd.f32 0.0, %v179
  %v181 = vpop.f32.mrf.mxu0
  %182 = vmatprep.mubr.f32.mxu0 0.0
  %183 = vmatmul.mubr.f32.gmra.mxu0 %v70
  %v184 = vpop.f32.mrf.mxu0
  %v185 = vadd.f32 0.0, %v184
  %v186 = vpop.f32.mrf.mxu0
  %187 = vmatprep.mubr.f32.mxu0 0.0
  %188 = vmatmul.mubr.f32.gmra.mxu0 %v71
  %v189 = vpop.f32.mrf.mxu0
  %v190 = vadd.f32 0.0, %v189
  %v191 = vpop.f32.mrf.mxu0
  %192 = vdwg.mxu0
  %v193 = vld [vmem:[%s2 + $0x80] sm:$0xff]
  %v194 = vld [vmem:[%s2 + $0x88] sm:$0xff]
  %v195 = vld [vmem:[%s2 + $0x90] sm:$0xff]
  %v196 = vld [vmem:[%s2 + $0x98] sm:$0xff]
  %v197 = vld [vmem:[%s2 + $0xa0] sm:$0x1]
  %v198 = vld [vmem:[%s1] sm:$0xff]
  %v199 = vld [vmem:[%s1 + $0x8] sm:$0xff]
  %v200 = vld [vmem:[%s1 + $0x10] sm:$0xff]
  %v201 = vld [vmem:[%s1 + $0x18] sm:$0xff]
  %v202 = vld [vmem:[%s1 + $0x20] sm:$0xff]
  %v203 = vld [vmem:[%s1 + $0x28] sm:$0xff]
  %v204 = vld [vmem:[%s1 + $0x30] sm:$0xff]
  %v205 = vld [vmem:[%s1 + $0x38] sm:$0xff]
  %v206 = vlaneseq
  %v207 = vshrl.u32 %v206, 7
  %v208 = vsub.s32 0, %v207
  %v209 = vrot.slane %v197, %v208
  %211 = vrot.lane.b32.xlu0 %v209, 96
  %v212 = vpop.permute.xlu0 %211
  %vm213 = vcmask 261120
  %v214 = vsel %vm213, %v212, 0
  %216 = vmatprep.subr.mxu0 0.0
  %217 = vmatpush1.msra.mxu0 0.0
  %218 = vmatprep.subr.mxu0 0.0
  %219 = vmatpush1.msra.mxu0 0.0
  %220 = vmatprep.subr.mxu0 0.0
  %221 = vmatpush1.msra.mxu0 0.0
  %222 = vmatprep.subr.mxu0 0.0
  %223 = vmatpush1.msra.mxu0 0.0
  %224 = vmatprep.subr.mxu0 0.0
  %225 = vmatpush1.msra.mxu0 0.0
  %226 = vmatprep.subr.mxu0 0.0
  %227 = vmatpush1.msra.mxu0 0.0
  %228 = vmatprep.subr.mxu0 0.0
  %229 = vmatpush1.msra.mxu0 0.0
  %230 = vmatprep.subr.mxu0 0.0
  %231 = vmatpush1.msra.mxu0 0.0
  %232 = vmatprep.subr.mxu0 0.0
  %233 = vmatpush1.msra.mxu0 0.0
  %234 = vmatprep.subr.mxu0 0.0
  %235 = vmatpush1.msra.mxu0 0.0
  %236 = vmatprep.subr.mxu0 0.0
  %237 = vmatpush1.msra.mxu0 0.0
  %238 = vmatprep.subr.mxu0 0.0
  %239 = vmatpush1.msra.mxu0 0.0
  %240 = vmatprep.subr.mxu0 0.0
  %241 = vmatpush1.msra.mxu0 %v196
  %242 = vmatprep.subr.mxu0 0.0
  %243 = vmatpush1.msra.mxu0 %v195
  %244 = vmatprep.subr.mxu0 0.0
  %245 = vmatpush1.msra.mxu0 %v194
  %246 = vmatprep.subr.mxu0 0.0
  %247 = vmatpush1.msra.mxu0 %v193
  %248 = vmatprep.subr.mxu0 0.0
  %249 = vmatpush2.msra.mxu0 0.0
  %250 = vmatprep.subr.mxu0 0.0
  %251 = vmatpush2.msra.mxu0 0.0
  %252 = vmatprep.subr.mxu0 0.0
  %253 = vmatpush2.msra.mxu0 0.0
  %254 = vmatprep.subr.mxu0 0.0
  %255 = vmatpush2.msra.mxu0 0.0
  %256 = vmatprep.subr.mxu0 0.0
  %257 = vmatpush2.msra.mxu0 0.0
  %258 = vmatprep.subr.mxu0 0.0
  %259 = vmatpush2.msra.mxu0 0.0
  %260 = vmatprep.subr.mxu0 0.0
  %261 = vmatpush2.msra.mxu0 0.0
  %262 = vmatprep.subr.mxu0 0.0
  %263 = vmatpush2.msra.mxu0 0.0
  %264 = vmatprep.subr.mxu0 0.0
  %265 = vmatpush2.msra.mxu0 0.0
  %266 = vmatprep.subr.mxu0 0.0
  %267 = vmatpush2.msra.mxu0 0.0
  %268 = vmatprep.subr.mxu0 0.0
  %269 = vmatpush2.msra.mxu0 0.0
  %270 = vmatprep.subr.mxu0 0.0
  %271 = vmatpush2.msra.mxu0 0.0
  %272 = vmatprep.subr.mxu0 0.0
  %273 = vmatpush2.msra.mxu0 0.0
  %274 = vmatprep.subr.mxu0 0.0
  %275 = vmatpush2.msra.mxu0 0.0
  %276 = vmatprep.subr.mxu0 0.0
  %277 = vmatpush2.msra.mxu0 0.0
  %278 = vmatprep.subr.mxu0 0.0
  %279 = vmatpush2.msra.mxu0 0.0
  %280 = vmatprep.mubr.f32.mxu0 0.0
  %281 = vmatmul.mubr.f32.gmra.mxu0 %v214
  %v282 = vpop.f32.mrf.mxu0
  %v283 = vadd.f32 0.0, %v282
  %v284 = vpop.f32.mrf.mxu0
  %285 = vdwg.mxu0
  %v286 = vadd.f32 %v155, %v283
  %v287 = vxor.u32 %v286, 2147483648
  %v288 = vmul.f32 %v287, 1.442695
  %v289 = vpow.pop %v288
  %v290 = vadd.f32 %v289, 1.0
  %v291 = vrcp.pop %v290
  %v292 = vmul.f32 1.0, %v291
  %293 = vrot.lane.b32.xlu0 %v209, 64
  %v294 = vpop.permute.xlu0 %293
  %v296 = vadd.f32 %v283, %v294
  %298 = vrot.lane.b32.xlu0 %v296, 64
  %v299 = vpop.permute.xlu0 %298
  %v301 = vmul.f32 %v292, %v299
  %303 = vrot.lane.b32.xlu0 %v301, 64
  %v304 = vpop.permute.xlu0 %303
  %v306 = vadd.f32 %v155, %v304
  %v307 = vtanh.pop %v306
  %309 = vrot.lane.b32.xlu0 %v307, 96
  %v310 = vpop.permute.xlu0 %309
  %v312 = vsub.f32 %v209, %v310
  %v313 = vmul.f32 %v292, %v312
  %315 = vrot.lane.b32.xlu0 %v313, 32
  %v316 = vpop.permute.xlu0 %315
  %v318 = vadd.f32 %v307, %v316
  %319 = vrot.lane.b32.xlu0 %v209, 32
  %v320 = vpop.permute.xlu0 %319
  %v322 = vsub.f32 %v318, %v320
  %324 = vrot.lane.b32.xlu0 %v322, 64
  %v325 = vpop.permute.xlu0 %324
  %v327 = vmul.f32 %v198, %v325
  %329 = vrot.lane.b32.xlu0 %v327, 32
  %v330 = vpop.permute.xlu0 %329
  %v332 = vadd.f32 %v209, %v330
  %334 = vrot.lane.b32.xlu0 %v332, 96
  %v335 = vpop.permute.xlu0 %334
  %v336 = vsel %vm213, %v335, 0
  %338 = vmatprep.subr.mxu0 0.0
  %339 = vmatpush1.msra.mxu0 0.0
  %340 = vmatprep.subr.mxu0 0.0
  %341 = vmatpush1.msra.mxu0 0.0
  %342 = vmatprep.subr.mxu0 0.0
  %343 = vmatpush1.msra.mxu0 0.0
  %344 = vmatprep.subr.mxu0 0.0
  %345 = vmatpush1.msra.mxu0 0.0
  %346 = vmatprep.subr.mxu0 0.0
  %347 = vmatpush1.msra.mxu0 0.0
  %348 = vmatprep.subr.mxu0 0.0
  %349 = vmatpush1.msra.mxu0 0.0
  %350 = vmatprep.subr.mxu0 0.0
  %351 = vmatpush1.msra.mxu0 0.0
  %352 = vmatprep.subr.mxu0 0.0
  %353 = vmatpush1.msra.mxu0 0.0
  %354 = vmatprep.subr.mxu0 0.0
  %355 = vmatpush1.msra.mxu0 0.0
  %356 = vmatprep.subr.mxu0 0.0
  %357 = vmatpush1.msra.mxu0 0.0
  %358 = vmatprep.subr.mxu0 0.0
  %359 = vmatpush1.msra.mxu0 0.0
  %360 = vmatprep.subr.mxu0 0.0
  %361 = vmatpush1.msra.mxu0 0.0
  %362 = vmatprep.subr.mxu0 0.0
  %363 = vmatpush1.msra.mxu0 %v196
  %364 = vmatprep.subr.mxu0 0.0
  %365 = vmatpush1.msra.mxu0 %v195
  %366 = vmatprep.subr.mxu0 0.0
  %367 = vmatpush1.msra.mxu0 %v194
  %368 = vmatprep.subr.mxu0 0.0
  %369 = vmatpush1.msra.mxu0 %v193
  %370 = vmatprep.subr.mxu0 0.0
  %371 = vmatpush2.msra.mxu0 0.0
  %372 = vmatprep.subr.mxu0 0.0
  %373 = vmatpush2.msra.mxu0 0.0
  %374 = vmatprep.subr.mxu0 0.0
  %375 = vmatpush2.msra.mxu0 0.0
  %376 = vmatprep.subr.mxu0 0.0
  %377 = vmatpush2.msra.mxu0 0.0
  %378 = vmatprep.subr.mxu0 0.0
  %379 = vmatpush2.msra.mxu0 0.0
  %380 = vmatprep.subr.mxu0 0.0
  %381 = vmatpush2.msra.mxu0 0.0
  %382 = vmatprep.subr.mxu0 0.0
  %383 = vmatpush2.msra.mxu0 0.0
  %384 = vmatprep.subr.mxu0 0.0
  %385 = vmatpush2.msra.mxu0 0.0
  %386 = vmatprep.subr.mxu0 0.0
  %387 = vmatpush2.msra.mxu0 0.0
  %388 = vmatprep.subr.mxu0 0.0
  %389 = vmatpush2.msra.mxu0 0.0
  %390 = vmatprep.subr.mxu0 0.0
  %391 = vmatpush2.msra.mxu0 0.0
  %392 = vmatprep.subr.mxu0 0.0
  %393 = vmatpush2.msra.mxu0 0.0
  %394 = vmatprep.subr.mxu0 0.0
  %395 = vmatpush2.msra.mxu0 0.0
  %396 = vmatprep.subr.mxu0 0.0
  %397 = vmatpush2.msra.mxu0 0.0
  %398 = vmatprep.subr.mxu0 0.0
  %399 = vmatpush2.msra.mxu0 0.0
  %400 = vmatprep.subr.mxu0 0.0
  %401 = vmatpush2.msra.mxu0 0.0
  %402 = vmatprep.mubr.f32.mxu0 0.0
  %403 = vmatmul.mubr.f32.gmra.mxu0 %v336
  %v404 = vpop.f32.mrf.mxu0
  %v405 = vadd.f32 0.0, %v404
  %v406 = vpop.f32.mrf.mxu0
  %407 = vdwg.mxu0
  %v408 = vadd.f32 %v160, %v405
  %v409 = vxor.u32 %v408, 2147483648
  %v410 = vmul.f32 %v409, 1.442695
  %v411 = vpow.pop %v410
  %v412 = vadd.f32 %v411, 1.0
  %v413 = vrcp.pop %v412
  %v414 = vmul.f32 1.0, %v413
  %v415 = vadd.f32 %v405, %v294
  %417 = vrot.lane.b32.xlu0 %v415, 64
  %v418 = vpop.permute.xlu0 %417
  %v420 = vmul.f32 %v414, %v418
  %422 = vrot.lane.b32.xlu0 %v420, 64
  %v423 = vpop.permute.xlu0 %422
  %v425 = vadd.f32 %v160, %v423
  %v426 = vtanh.pop %v425
  %428 = vrot.lane.b32.xlu0 %v426, 96
  %v429 = vpop.permute.xlu0 %428
  %v431 = vsub.f32 %v332, %v429
  %v432 = vmul.f32 %v414, %v431
  %434 = vrot.lane.b32.xlu0 %v432, 32
  %v435 = vpop.permute.xlu0 %434
  %v437 = vadd.f32 %v426, %v435
  %438 = vrot.lane.b32.xlu0 %v332, 32
  %v439 = vpop.permute.xlu0 %438
  %v441 = vsub.f32 %v437, %v439
  %443 = vrot.lane.b32.xlu0 %v441, 64
  %v444 = vpop.permute.xlu0 %443
  %v446 = vmul.f32 %v199, %v444
  %448 = vrot.lane.b32.xlu0 %v446, 32
  %v449 = vpop.permute.xlu0 %448
  %v451 = vadd.f32 %v332, %v449
  %453 = vrot.lane.b32.xlu0 %v451, 96
  %v454 = vpop.permute.xlu0 %453
  %v455 = vsel %vm213, %v454, 0
  %457 = vmatprep.subr.mxu0 0.0
  %458 = vmatpush1.msra.mxu0 0.0
  %459 = vmatprep.subr.mxu0 0.0
  %460 = vmatpush1.msra.mxu0 0.0
  %461 = vmatprep.subr.mxu0 0.0
  %462 = vmatpush1.msra.mxu0 0.0
  %463 = vmatprep.subr.mxu0 0.0
  %464 = vmatpush1.msra.mxu0 0.0
  %465 = vmatprep.subr.mxu0 0.0
  %466 = vmatpush1.msra.mxu0 0.0
  %467 = vmatprep.subr.mxu0 0.0
  %468 = vmatpush1.msra.mxu0 0.0
  %469 = vmatprep.subr.mxu0 0.0
  %470 = vmatpush1.msra.mxu0 0.0
  %471 = vmatprep.subr.mxu0 0.0
  %472 = vmatpush1.msra.mxu0 0.0
  %473 = vmatprep.subr.mxu0 0.0
  %474 = vmatpush1.msra.mxu0 0.0
  %475 = vmatprep.subr.mxu0 0.0
  %476 = vmatpush1.msra.mxu0 0.0
  %477 = vmatprep.subr.mxu0 0.0
  %478 = vmatpush1.msra.mxu0 0.0
  %479 = vmatprep.subr.mxu0 0.0
  %480 = vmatpush1.msra.mxu0 0.0
  %481 = vmatprep.subr.mxu0 0.0
  %482 = vmatpush1.msra.mxu0 %v196
  %483 = vmatprep.subr.mxu0 0.0
  %484 = vmatpush1.msra.mxu0 %v195
  %485 = vmatprep.subr.mxu0 0.0
  %486 = vmatpush1.msra.mxu0 %v194
  %487 = vmatprep.subr.mxu0 0.0
  %488 = vmatpush1.msra.mxu0 %v193
  %489 = vmatprep.subr.mxu0 0.0
  %490 = vmatpush2.msra.mxu0 0.0
  %491 = vmatprep.subr.mxu0 0.0
  %492 = vmatpush2.msra.mxu0 0.0
  %493 = vmatprep.subr.mxu0 0.0
  %494 = vmatpush2.msra.mxu0 0.0
  %495 = vmatprep.subr.mxu0 0.0
  %496 = vmatpush2.msra.mxu0 0.0
  %497 = vmatprep.subr.mxu0 0.0
  %498 = vmatpush2.msra.mxu0 0.0
  %499 = vmatprep.subr.mxu0 0.0
  %500 = vmatpush2.msra.mxu0 0.0
  %501 = vmatprep.subr.mxu0 0.0
  %502 = vmatpush2.msra.mxu0 0.0
  %503 = vmatprep.subr.mxu0 0.0
  %504 = vmatpush2.msra.mxu0 0.0
  %505 = vmatprep.subr.mxu0 0.0
  %506 = vmatpush2.msra.mxu0 0.0
  %507 = vmatprep.subr.mxu0 0.0
  %508 = vmatpush2.msra.mxu0 0.0
  %509 = vmatprep.subr.mxu0 0.0
  %510 = vmatpush2.msra.mxu0 0.0
  %511 = vmatprep.subr.mxu0 0.0
  %512 = vmatpush2.msra.mxu0 0.0
  %513 = vmatprep.subr.mxu0 0.0
  %514 = vmatpush2.msra.mxu0 0.0
  %515 = vmatprep.subr.mxu0 0.0
  %516 = vmatpush2.msra.mxu0 0.0
  %517 = vmatprep.subr.mxu0 0.0
  %518 = vmatpush2.msra.mxu0 0.0
  %519 = vmatprep.subr.mxu0 0.0
  %520 = vmatpush2.msra.mxu0 0.0
  %521 = vmatprep.mubr.f32.mxu0 0.0
  %522 = vmatmul.mubr.f32.gmra.mxu0 %v455
  %v523 = vpop.f32.mrf.mxu0
  %v524 = vadd.f32 0.0, %v523
  %v525 = vpop.f32.mrf.mxu0
  %526 = vdwg.mxu0
  %v527 = vadd.f32 %v165, %v524
  %v528 = vxor.u32 %v527, 2147483648
  %v529 = vmul.f32 %v528, 1.442695
  %v530 = vpow.pop %v529
  %v531 = vadd.f32 %v530, 1.0
  %v532 = vrcp.pop %v531
  %v533 = vmul.f32 1.0, %v532
  %v534 = vadd.f32 %v524, %v294
  %536 = vrot.lane.b32.xlu0 %v534, 64
  %v537 = vpop.permute.xlu0 %536
  %v539 = vmul.f32 %v533, %v537
  %541 = vrot.lane.b32.xlu0 %v539, 64
  %v542 = vpop.permute.xlu0 %541
  %v544 = vadd.f32 %v165, %v542
  %v545 = vtanh.pop %v544
  %547 = vrot.lane.b32.xlu0 %v545, 96
  %v548 = vpop.permute.xlu0 %547
  %v550 = vsub.f32 %v451, %v548
  %v551 = vmul.f32 %v533, %v550
  %553 = vrot.lane.b32.xlu0 %v551, 32
  %v554 = vpop.permute.xlu0 %553
  %v556 = vadd.f32 %v545, %v554
  %557 = vrot.lane.b32.xlu0 %v451, 32
  %v558 = vpop.permute.xlu0 %557
  %v560 = vsub.f32 %v556, %v558
  %562 = vrot.lane.b32.xlu0 %v560, 64
  %v563 = vpop.permute.xlu0 %562
  %v565 = vmul.f32 %v200, %v563
  %567 = vrot.lane.b32.xlu0 %v565, 32
  %v568 = vpop.permute.xlu0 %567
  %v570 = vadd.f32 %v451, %v568
  %572 = vrot.lane.b32.xlu0 %v570, 96
  %v573 = vpop.permute.xlu0 %572
  %v574 = vsel %vm213, %v573, 0
  %576 = vmatprep.subr.mxu0 0.0
  %577 = vmatpush1.msra.mxu0 0.0
  %578 = vmatprep.subr.mxu0 0.0
  %579 = vmatpush1.msra.mxu0 0.0
  %580 = vmatprep.subr.mxu0 0.0
  %581 = vmatpush1.msra.mxu0 0.0
  %582 = vmatprep.subr.mxu0 0.0
  %583 = vmatpush1.msra.mxu0 0.0
  %584 = vmatprep.subr.mxu0 0.0
  %585 = vmatpush1.msra.mxu0 0.0
  %586 = vmatprep.subr.mxu0 0.0
  %587 = vmatpush1.msra.mxu0 0.0
  %588 = vmatprep.subr.mxu0 0.0
  %589 = vmatpush1.msra.mxu0 0.0
  %590 = vmatprep.subr.mxu0 0.0
  %591 = vmatpush1.msra.mxu0 0.0
  %592 = vmatprep.subr.mxu0 0.0
  %593 = vmatpush1.msra.mxu0 0.0
  %594 = vmatprep.subr.mxu0 0.0
  %595 = vmatpush1.msra.mxu0 0.0
  %596 = vmatprep.subr.mxu0 0.0
  %597 = vmatpush1.msra.mxu0 0.0
  %598 = vmatprep.subr.mxu0 0.0
  %599 = vmatpush1.msra.mxu0 0.0
  %600 = vmatprep.subr.mxu0 0.0
  %601 = vmatpush1.msra.mxu0 %v196
  %602 = vmatprep.subr.mxu0 0.0
  %603 = vmatpush1.msra.mxu0 %v195
  %604 = vmatprep.subr.mxu0 0.0
  %605 = vmatpush1.msra.mxu0 %v194
  %606 = vmatprep.subr.mxu0 0.0
  %607 = vmatpush1.msra.mxu0 %v193
  %608 = vmatprep.subr.mxu0 0.0
  %609 = vmatpush2.msra.mxu0 0.0
  %610 = vmatprep.subr.mxu0 0.0
  %611 = vmatpush2.msra.mxu0 0.0
  %612 = vmatprep.subr.mxu0 0.0
  %613 = vmatpush2.msra.mxu0 0.0
  %614 = vmatprep.subr.mxu0 0.0
  %615 = vmatpush2.msra.mxu0 0.0
  %616 = vmatprep.subr.mxu0 0.0
  %617 = vmatpush2.msra.mxu0 0.0
  %618 = vmatprep.subr.mxu0 0.0
  %619 = vmatpush2.msra.mxu0 0.0
  %620 = vmatprep.subr.mxu0 0.0
  %621 = vmatpush2.msra.mxu0 0.0
  %622 = vmatprep.subr.mxu0 0.0
  %623 = vmatpush2.msra.mxu0 0.0
  %624 = vmatprep.subr.mxu0 0.0
  %625 = vmatpush2.msra.mxu0 0.0
  %626 = vmatprep.subr.mxu0 0.0
  %627 = vmatpush2.msra.mxu0 0.0
  %628 = vmatprep.subr.mxu0 0.0
  %629 = vmatpush2.msra.mxu0 0.0
  %630 = vmatprep.subr.mxu0 0.0
  %631 = vmatpush2.msra.mxu0 0.0
  %632 = vmatprep.subr.mxu0 0.0
  %633 = vmatpush2.msra.mxu0 0.0
  %634 = vmatprep.subr.mxu0 0.0
  %635 = vmatpush2.msra.mxu0 0.0
  %636 = vmatprep.subr.mxu0 0.0
  %637 = vmatpush2.msra.mxu0 0.0
  %638 = vmatprep.subr.mxu0 0.0
  %639 = vmatpush2.msra.mxu0 0.0
  %640 = vmatprep.mubr.f32.mxu0 0.0
  %641 = vmatmul.mubr.f32.gmra.mxu0 %v574
  %v642 = vpop.f32.mrf.mxu0
  %v643 = vadd.f32 0.0, %v642
  %v644 = vpop.f32.mrf.mxu0
  %645 = vdwg.mxu0
  %v646 = vadd.f32 %v170, %v643
  %v647 = vxor.u32 %v646, 2147483648
  %v648 = vmul.f32 %v647, 1.442695
  %v649 = vpow.pop %v648
  %v650 = vadd.f32 %v649, 1.0
  %v651 = vrcp.pop %v650
  %v652 = vmul.f32 1.0, %v651
  %v653 = vadd.f32 %v643, %v294
  %655 = vrot.lane.b32.xlu0 %v653, 64
  %v656 = vpop.permute.xlu0 %655
  %v658 = vmul.f32 %v652, %v656
  %660 = vrot.lane.b32.xlu0 %v658, 64
  %v661 = vpop.permute.xlu0 %660
  %v663 = vadd.f32 %v170, %v661
  %v664 = vtanh.pop %v663
  %666 = vrot.lane.b32.xlu0 %v664, 96
  %v667 = vpop.permute.xlu0 %666
  %v669 = vsub.f32 %v570, %v667
  %v670 = vmul.f32 %v652, %v669
  %672 = vrot.lane.b32.xlu0 %v670, 32
  %v673 = vpop.permute.xlu0 %672
  %v675 = vadd.f32 %v664, %v673
  %676 = vrot.lane.b32.xlu0 %v570, 32
  %v677 = vpop.permute.xlu0 %676
  %v679 = vsub.f32 %v675, %v677
  %681 = vrot.lane.b32.xlu0 %v679, 64
  %v682 = vpop.permute.xlu0 %681
  %v684 = vmul.f32 %v201, %v682
  %686 = vrot.lane.b32.xlu0 %v684, 32
  %v687 = vpop.permute.xlu0 %686
  %v689 = vadd.f32 %v570, %v687
  %691 = vrot.lane.b32.xlu0 %v689, 96
  %v692 = vpop.permute.xlu0 %691
  %v693 = vsel %vm213, %v692, 0
  %695 = vmatprep.subr.mxu0 0.0
  %696 = vmatpush1.msra.mxu0 0.0
  %697 = vmatprep.subr.mxu0 0.0
  %698 = vmatpush1.msra.mxu0 0.0
  %699 = vmatprep.subr.mxu0 0.0
  %700 = vmatpush1.msra.mxu0 0.0
  %701 = vmatprep.subr.mxu0 0.0
  %702 = vmatpush1.msra.mxu0 0.0
  %703 = vmatprep.subr.mxu0 0.0
  %704 = vmatpush1.msra.mxu0 0.0
  %705 = vmatprep.subr.mxu0 0.0
  %706 = vmatpush1.msra.mxu0 0.0
  %707 = vmatprep.subr.mxu0 0.0
  %708 = vmatpush1.msra.mxu0 0.0
  %709 = vmatprep.subr.mxu0 0.0
  %710 = vmatpush1.msra.mxu0 0.0
  %711 = vmatprep.subr.mxu0 0.0
  %712 = vmatpush1.msra.mxu0 0.0
  %713 = vmatprep.subr.mxu0 0.0
  %714 = vmatpush1.msra.mxu0 0.0
  %715 = vmatprep.subr.mxu0 0.0
  %716 = vmatpush1.msra.mxu0 0.0
  %717 = vmatprep.subr.mxu0 0.0
  %718 = vmatpush1.msra.mxu0 0.0
  %719 = vmatprep.subr.mxu0 0.0
  %720 = vmatpush1.msra.mxu0 %v196
  %721 = vmatprep.subr.mxu0 0.0
  %722 = vmatpush1.msra.mxu0 %v195
  %723 = vmatprep.subr.mxu0 0.0
  %724 = vmatpush1.msra.mxu0 %v194
  %725 = vmatprep.subr.mxu0 0.0
  %726 = vmatpush1.msra.mxu0 %v193
  %727 = vmatprep.subr.mxu0 0.0
  %728 = vmatpush2.msra.mxu0 0.0
  %729 = vmatprep.subr.mxu0 0.0
  %730 = vmatpush2.msra.mxu0 0.0
  %731 = vmatprep.subr.mxu0 0.0
  %732 = vmatpush2.msra.mxu0 0.0
  %733 = vmatprep.subr.mxu0 0.0
  %734 = vmatpush2.msra.mxu0 0.0
  %735 = vmatprep.subr.mxu0 0.0
  %736 = vmatpush2.msra.mxu0 0.0
  %737 = vmatprep.subr.mxu0 0.0
  %738 = vmatpush2.msra.mxu0 0.0
  %739 = vmatprep.subr.mxu0 0.0
  %740 = vmatpush2.msra.mxu0 0.0
  %741 = vmatprep.subr.mxu0 0.0
  %742 = vmatpush2.msra.mxu0 0.0
  %743 = vmatprep.subr.mxu0 0.0
  %744 = vmatpush2.msra.mxu0 0.0
  %745 = vmatprep.subr.mxu0 0.0
  %746 = vmatpush2.msra.mxu0 0.0
  %747 = vmatprep.subr.mxu0 0.0
  %748 = vmatpush2.msra.mxu0 0.0
  %749 = vmatprep.subr.mxu0 0.0
  %750 = vmatpush2.msra.mxu0 0.0
  %751 = vmatprep.subr.mxu0 0.0
  %752 = vmatpush2.msra.mxu0 0.0
  %753 = vmatprep.subr.mxu0 0.0
  %754 = vmatpush2.msra.mxu0 0.0
  %755 = vmatprep.subr.mxu0 0.0
  %756 = vmatpush2.msra.mxu0 0.0
  %757 = vmatprep.subr.mxu0 0.0
  %758 = vmatpush2.msra.mxu0 0.0
  %759 = vmatprep.mubr.f32.mxu0 0.0
  %760 = vmatmul.mubr.f32.gmra.mxu0 %v693
  %v761 = vpop.f32.mrf.mxu0
  %v762 = vadd.f32 0.0, %v761
  %v763 = vpop.f32.mrf.mxu0
  %764 = vdwg.mxu0
  %v765 = vadd.f32 %v175, %v762
  %v766 = vxor.u32 %v765, 2147483648
  %v767 = vmul.f32 %v766, 1.442695
  %v768 = vpow.pop %v767
  %v769 = vadd.f32 %v768, 1.0
  %v770 = vrcp.pop %v769
  %v771 = vmul.f32 1.0, %v770
  %v772 = vadd.f32 %v762, %v294
  %774 = vrot.lane.b32.xlu0 %v772, 64
  %v775 = vpop.permute.xlu0 %774
  %v777 = vmul.f32 %v771, %v775
  %779 = vrot.lane.b32.xlu0 %v777, 64
  %v780 = vpop.permute.xlu0 %779
  %v782 = vadd.f32 %v175, %v780
  %v783 = vtanh.pop %v782
  %785 = vrot.lane.b32.xlu0 %v783, 96
  %v786 = vpop.permute.xlu0 %785
  %v788 = vsub.f32 %v689, %v786
  %v789 = vmul.f32 %v771, %v788
  %791 = vrot.lane.b32.xlu0 %v789, 32
  %v792 = vpop.permute.xlu0 %791
  %v794 = vadd.f32 %v783, %v792
  %795 = vrot.lane.b32.xlu0 %v689, 32
  %v796 = vpop.permute.xlu0 %795
  %v798 = vsub.f32 %v794, %v796
  %800 = vrot.lane.b32.xlu0 %v798, 64
  %v801 = vpop.permute.xlu0 %800
  %v803 = vmul.f32 %v202, %v801
  %805 = vrot.lane.b32.xlu0 %v803, 32
  %v806 = vpop.permute.xlu0 %805
  %v808 = vadd.f32 %v689, %v806
  %810 = vrot.lane.b32.xlu0 %v808, 96
  %v811 = vpop.permute.xlu0 %810
  %v812 = vsel %vm213, %v811, 0
  %814 = vmatprep.subr.mxu0 0.0
  %815 = vmatpush1.msra.mxu0 0.0
  %816 = vmatprep.subr.mxu0 0.0
  %817 = vmatpush1.msra.mxu0 0.0
  %818 = vmatprep.subr.mxu0 0.0
  %819 = vmatpush1.msra.mxu0 0.0
  %820 = vmatprep.subr.mxu0 0.0
  %821 = vmatpush1.msra.mxu0 0.0
  %822 = vmatprep.subr.mxu0 0.0
  %823 = vmatpush1.msra.mxu0 0.0
  %824 = vmatprep.subr.mxu0 0.0
  %825 = vmatpush1.msra.mxu0 0.0
  %826 = vmatprep.subr.mxu0 0.0
  %827 = vmatpush1.msra.mxu0 0.0
  %828 = vmatprep.subr.mxu0 0.0
  %829 = vmatpush1.msra.mxu0 0.0
  %830 = vmatprep.subr.mxu0 0.0
  %831 = vmatpush1.msra.mxu0 0.0
  %832 = vmatprep.subr.mxu0 0.0
  %833 = vmatpush1.msra.mxu0 0.0
  %834 = vmatprep.subr.mxu0 0.0
  %835 = vmatpush1.msra.mxu0 0.0
  %836 = vmatprep.subr.mxu0 0.0
  %837 = vmatpush1.msra.mxu0 0.0
  %838 = vmatprep.subr.mxu0 0.0
  %839 = vmatpush1.msra.mxu0 %v196
  %840 = vmatprep.subr.mxu0 0.0
  %841 = vmatpush1.msra.mxu0 %v195
  %842 = vmatprep.subr.mxu0 0.0
  %843 = vmatpush1.msra.mxu0 %v194
  %844 = vmatprep.subr.mxu0 0.0
  %845 = vmatpush1.msra.mxu0 %v193
  %846 = vmatprep.subr.mxu0 0.0
  %847 = vmatpush2.msra.mxu0 0.0
  %848 = vmatprep.subr.mxu0 0.0
  %849 = vmatpush2.msra.mxu0 0.0
  %850 = vmatprep.subr.mxu0 0.0
  %851 = vmatpush2.msra.mxu0 0.0
  %852 = vmatprep.subr.mxu0 0.0
  %853 = vmatpush2.msra.mxu0 0.0
  %854 = vmatprep.subr.mxu0 0.0
  %855 = vmatpush2.msra.mxu0 0.0
  %856 = vmatprep.subr.mxu0 0.0
  %857 = vmatpush2.msra.mxu0 0.0
  %858 = vmatprep.subr.mxu0 0.0
  %859 = vmatpush2.msra.mxu0 0.0
  %860 = vmatprep.subr.mxu0 0.0
  %861 = vmatpush2.msra.mxu0 0.0
  %862 = vmatprep.subr.mxu0 0.0
  %863 = vmatpush2.msra.mxu0 0.0
  %864 = vmatprep.subr.mxu0 0.0
  %865 = vmatpush2.msra.mxu0 0.0
  %866 = vmatprep.subr.mxu0 0.0
  %867 = vmatpush2.msra.mxu0 0.0
  %868 = vmatprep.subr.mxu0 0.0
  %869 = vmatpush2.msra.mxu0 0.0
  %870 = vmatprep.subr.mxu0 0.0
  %871 = vmatpush2.msra.mxu0 0.0
  %872 = vmatprep.subr.mxu0 0.0
  %873 = vmatpush2.msra.mxu0 0.0
  %874 = vmatprep.subr.mxu0 0.0
  %875 = vmatpush2.msra.mxu0 0.0
  %876 = vmatprep.subr.mxu0 0.0
  %877 = vmatpush2.msra.mxu0 0.0
  %878 = vmatprep.mubr.f32.mxu0 0.0
  %879 = vmatmul.mubr.f32.gmra.mxu0 %v812
  %v880 = vpop.f32.mrf.mxu0
  %v881 = vadd.f32 0.0, %v880
  %v882 = vpop.f32.mrf.mxu0
  %883 = vdwg.mxu0
  %v884 = vadd.f32 %v180, %v881
  %v885 = vxor.u32 %v884, 2147483648
  %v886 = vmul.f32 %v885, 1.442695
  %v887 = vpow.pop %v886
  %v888 = vadd.f32 %v887, 1.0
  %v889 = vrcp.pop %v888
  %v890 = vmul.f32 1.0, %v889
  %v891 = vadd.f32 %v881, %v294
  %893 = vrot.lane.b32.xlu0 %v891, 64
  %v894 = vpop.permute.xlu0 %893
  %v896 = vmul.f32 %v890, %v894
  %898 = vrot.lane.b32.xlu0 %v896, 64
  %v899 = vpop.permute.xlu0 %898
  %v901 = vadd.f32 %v180, %v899
  %v902 = vtanh.pop %v901
  %904 = vrot.lane.b32.xlu0 %v902, 96
  %v905 = vpop.permute.xlu0 %904
  %v907 = vsub.f32 %v808, %v905
  %v908 = vmul.f32 %v890, %v907
  %910 = vrot.lane.b32.xlu0 %v908, 32
  %v911 = vpop.permute.xlu0 %910
  %v913 = vadd.f32 %v902, %v911
  %914 = vrot.lane.b32.xlu0 %v808, 32
  %v915 = vpop.permute.xlu0 %914
  %v917 = vsub.f32 %v913, %v915
  %919 = vrot.lane.b32.xlu0 %v917, 64
  %v920 = vpop.permute.xlu0 %919
  %v922 = vmul.f32 %v203, %v920
  %924 = vrot.lane.b32.xlu0 %v922, 32
  %v925 = vpop.permute.xlu0 %924
  %v927 = vadd.f32 %v808, %v925
  %929 = vrot.lane.b32.xlu0 %v927, 96
  %v930 = vpop.permute.xlu0 %929
  %v931 = vsel %vm213, %v930, 0
  %933 = vmatprep.subr.mxu0 0.0
  %934 = vmatpush1.msra.mxu0 0.0
  %935 = vmatprep.subr.mxu0 0.0
  %936 = vmatpush1.msra.mxu0 0.0
  %937 = vmatprep.subr.mxu0 0.0
  %938 = vmatpush1.msra.mxu0 0.0
  %939 = vmatprep.subr.mxu0 0.0
  %940 = vmatpush1.msra.mxu0 0.0
  %941 = vmatprep.subr.mxu0 0.0
  %942 = vmatpush1.msra.mxu0 0.0
  %943 = vmatprep.subr.mxu0 0.0
  %944 = vmatpush1.msra.mxu0 0.0
  %945 = vmatprep.subr.mxu0 0.0
  %946 = vmatpush1.msra.mxu0 0.0
  %947 = vmatprep.subr.mxu0 0.0
  %948 = vmatpush1.msra.mxu0 0.0
  %949 = vmatprep.subr.mxu0 0.0
  %950 = vmatpush1.msra.mxu0 0.0
  %951 = vmatprep.subr.mxu0 0.0
  %952 = vmatpush1.msra.mxu0 0.0
  %953 = vmatprep.subr.mxu0 0.0
  %954 = vmatpush1.msra.mxu0 0.0
  %955 = vmatprep.subr.mxu0 0.0
  %956 = vmatpush1.msra.mxu0 0.0
  %957 = vmatprep.subr.mxu0 0.0
  %958 = vmatpush1.msra.mxu0 %v196
  %959 = vmatprep.subr.mxu0 0.0
  %960 = vmatpush1.msra.mxu0 %v195
  %961 = vmatprep.subr.mxu0 0.0
  %962 = vmatpush1.msra.mxu0 %v194
  %963 = vmatprep.subr.mxu0 0.0
  %964 = vmatpush1.msra.mxu0 %v193
  %965 = vmatprep.subr.mxu0 0.0
  %966 = vmatpush2.msra.mxu0 0.0
  %967 = vmatprep.subr.mxu0 0.0
  %968 = vmatpush2.msra.mxu0 0.0
  %969 = vmatprep.subr.mxu0 0.0
  %970 = vmatpush2.msra.mxu0 0.0
  %971 = vmatprep.subr.mxu0 0.0
  %972 = vmatpush2.msra.mxu0 0.0
  %973 = vmatprep.subr.mxu0 0.0
  %974 = vmatpush2.msra.mxu0 0.0
  %975 = vmatprep.subr.mxu0 0.0
  %976 = vmatpush2.msra.mxu0 0.0
  %977 = vmatprep.subr.mxu0 0.0
  %978 = vmatpush2.msra.mxu0 0.0
  %979 = vmatprep.subr.mxu0 0.0
  %980 = vmatpush2.msra.mxu0 0.0
  %981 = vmatprep.subr.mxu0 0.0
  %982 = vmatpush2.msra.mxu0 0.0
  %983 = vmatprep.subr.mxu0 0.0
  %984 = vmatpush2.msra.mxu0 0.0
  %985 = vmatprep.subr.mxu0 0.0
  %986 = vmatpush2.msra.mxu0 0.0
  %987 = vmatprep.subr.mxu0 0.0
  %988 = vmatpush2.msra.mxu0 0.0
  %989 = vmatprep.subr.mxu0 0.0
  %990 = vmatpush2.msra.mxu0 0.0
  %991 = vmatprep.subr.mxu0 0.0
  %992 = vmatpush2.msra.mxu0 0.0
  %993 = vmatprep.subr.mxu0 0.0
  %994 = vmatpush2.msra.mxu0 0.0
  %995 = vmatprep.subr.mxu0 0.0
  %996 = vmatpush2.msra.mxu0 0.0
  %997 = vmatprep.mubr.f32.mxu0 0.0
  %998 = vmatmul.mubr.f32.gmra.mxu0 %v931
  %v999 = vpop.f32.mrf.mxu0
  %v1000 = vadd.f32 0.0, %v999
  %v1001 = vpop.f32.mrf.mxu0
  %1002 = vdwg.mxu0
  %v1003 = vadd.f32 %v185, %v1000
  %v1004 = vxor.u32 %v1003, 2147483648
  %v1005 = vmul.f32 %v1004, 1.442695
  %v1006 = vpow.pop %v1005
  %v1007 = vadd.f32 %v1006, 1.0
  %v1008 = vrcp.pop %v1007
  %v1009 = vmul.f32 1.0, %v1008
  %v1010 = vadd.f32 %v1000, %v294
  %1012 = vrot.lane.b32.xlu0 %v1010, 64
  %v1013 = vpop.permute.xlu0 %1012
  %v1015 = vmul.f32 %v1009, %v1013
  %1017 = vrot.lane.b32.xlu0 %v1015, 64
  %v1018 = vpop.permute.xlu0 %1017
  %v1020 = vadd.f32 %v185, %v1018
  %v1021 = vtanh.pop %v1020
  %1023 = vrot.lane.b32.xlu0 %v1021, 96
  %v1024 = vpop.permute.xlu0 %1023
  %v1026 = vsub.f32 %v927, %v1024
  %v1027 = vmul.f32 %v1009, %v1026
  %1029 = vrot.lane.b32.xlu0 %v1027, 32
  %v1030 = vpop.permute.xlu0 %1029
  %v1032 = vadd.f32 %v1021, %v1030
  %1033 = vrot.lane.b32.xlu0 %v927, 32
  %v1034 = vpop.permute.xlu0 %1033
  %v1036 = vsub.f32 %v1032, %v1034
  %1038 = vrot.lane.b32.xlu0 %v1036, 64
  %v1039 = vpop.permute.xlu0 %1038
  %v1041 = vmul.f32 %v204, %v1039
  %1043 = vrot.lane.b32.xlu0 %v1041, 32
  %v1044 = vpop.permute.xlu0 %1043
  %v1046 = vadd.f32 %v927, %v1044
  %1048 = vrot.lane.b32.xlu0 %v1046, 96
  %v1049 = vpop.permute.xlu0 %1048
  %v1050 = vsel %vm213, %v1049, 0
  %1052 = vmatprep.subr.mxu0 0.0
  %1053 = vmatpush1.msra.mxu0 0.0
  %1054 = vmatprep.subr.mxu0 0.0
  %1055 = vmatpush1.msra.mxu0 0.0
  %1056 = vmatprep.subr.mxu0 0.0
  %1057 = vmatpush1.msra.mxu0 0.0
  %1058 = vmatprep.subr.mxu0 0.0
  %1059 = vmatpush1.msra.mxu0 0.0
  %1060 = vmatprep.subr.mxu0 0.0
  %1061 = vmatpush1.msra.mxu0 0.0
  %1062 = vmatprep.subr.mxu0 0.0
  %1063 = vmatpush1.msra.mxu0 0.0
  %1064 = vmatprep.subr.mxu0 0.0
  %1065 = vmatpush1.msra.mxu0 0.0
  %1066 = vmatprep.subr.mxu0 0.0
  %1067 = vmatpush1.msra.mxu0 0.0
  %1068 = vmatprep.subr.mxu0 0.0
  %1069 = vmatpush1.msra.mxu0 0.0
  %1070 = vmatprep.subr.mxu0 0.0
  %1071 = vmatpush1.msra.mxu0 0.0
  %1072 = vmatprep.subr.mxu0 0.0
  %1073 = vmatpush1.msra.mxu0 0.0
  %1074 = vmatprep.subr.mxu0 0.0
  %1075 = vmatpush1.msra.mxu0 0.0
  %1076 = vmatprep.subr.mxu0 0.0
  %1077 = vmatpush1.msra.mxu0 %v196
  %1078 = vmatprep.subr.mxu0 0.0
  %1079 = vmatpush1.msra.mxu0 %v195
  %1080 = vmatprep.subr.mxu0 0.0
  %1081 = vmatpush1.msra.mxu0 %v194
  %1082 = vmatprep.subr.mxu0 0.0
  %1083 = vmatpush1.msra.mxu0 %v193
  %1084 = vmatprep.subr.mxu0 0.0
  %1085 = vmatpush2.msra.mxu0 0.0
  %1086 = vmatprep.subr.mxu0 0.0
  %1087 = vmatpush2.msra.mxu0 0.0
  %1088 = vmatprep.subr.mxu0 0.0
  %1089 = vmatpush2.msra.mxu0 0.0
  %1090 = vmatprep.subr.mxu0 0.0
  %1091 = vmatpush2.msra.mxu0 0.0
  %1092 = vmatprep.subr.mxu0 0.0
  %1093 = vmatpush2.msra.mxu0 0.0
  %1094 = vmatprep.subr.mxu0 0.0
  %1095 = vmatpush2.msra.mxu0 0.0
  %1096 = vmatprep.subr.mxu0 0.0
  %1097 = vmatpush2.msra.mxu0 0.0
  %1098 = vmatprep.subr.mxu0 0.0
  %1099 = vmatpush2.msra.mxu0 0.0
  %1100 = vmatprep.subr.mxu0 0.0
  %1101 = vmatpush2.msra.mxu0 0.0
  %1102 = vmatprep.subr.mxu0 0.0
  %1103 = vmatpush2.msra.mxu0 0.0
  %1104 = vmatprep.subr.mxu0 0.0
  %1105 = vmatpush2.msra.mxu0 0.0
  %1106 = vmatprep.subr.mxu0 0.0
  %1107 = vmatpush2.msra.mxu0 0.0
  %1108 = vmatprep.subr.mxu0 0.0
  %1109 = vmatpush2.msra.mxu0 0.0
  %1110 = vmatprep.subr.mxu0 0.0
  %1111 = vmatpush2.msra.mxu0 0.0
  %1112 = vmatprep.subr.mxu0 0.0
  %1113 = vmatpush2.msra.mxu0 0.0
  %1114 = vmatprep.subr.mxu0 0.0
  %1115 = vmatpush2.msra.mxu0 0.0
  %1116 = vmatprep.mubr.f32.mxu0 0.0
  %1117 = vmatmul.mubr.f32.gmra.mxu0 %v1050
  %v1118 = vpop.f32.mrf.mxu0
  %v1119 = vadd.f32 0.0, %v1118
  %v1120 = vpop.f32.mrf.mxu0
  %1121 = vdwg.mxu0
  %v1122 = vadd.f32 %v190, %v1119
  %v1123 = vxor.u32 %v1122, 2147483648
  %v1124 = vmul.f32 %v1123, 1.442695
  %v1125 = vpow.pop %v1124
  %v1126 = vadd.f32 %v1125, 1.0
  %v1127 = vrcp.pop %v1126
  %v1128 = vmul.f32 1.0, %v1127
  %v1129 = vadd.f32 %v1119, %v294
  %1131 = vrot.lane.b32.xlu0 %v1129, 64
  %v1132 = vpop.permute.xlu0 %1131
  %v1134 = vmul.f32 %v1128, %v1132
  %1136 = vrot.lane.b32.xlu0 %v1134, 64
  %v1137 = vpop.permute.xlu0 %1136
  %v1139 = vadd.f32 %v190, %v1137
  %v1140 = vtanh.pop %v1139
  %1142 = vrot.lane.b32.xlu0 %v1140, 96
  %v1143 = vpop.permute.xlu0 %1142
  %v1145 = vsub.f32 %v1046, %v1143
  %v1146 = vmul.f32 %v1128, %v1145
  %1148 = vrot.lane.b32.xlu0 %v1146, 32
  %v1149 = vpop.permute.xlu0 %1148
  %v1151 = vadd.f32 %v1140, %v1149
  %1152 = vrot.lane.b32.xlu0 %v1046, 32
  %v1153 = vpop.permute.xlu0 %1152
  %v1155 = vsub.f32 %v1151, %v1153
  %1157 = vrot.lane.b32.xlu0 %v1155, 64
  %v1158 = vpop.permute.xlu0 %1157
  %v1160 = vmul.f32 %v205, %v1158
  %1162 = vrot.lane.b32.xlu0 %v1160, 32
  %v1163 = vpop.permute.xlu0 %1162
  %v1165 = vadd.f32 %v1046, %v1163
  %1167 = vrot.lane.b32.xlu0 %v1165, 96
  %v1168 = vpop.permute.xlu0 %1167
  %1173 = vrot.lane.b32.xlu0 %v193, 32
  %v1174 = vpop.permute.xlu0 %1173
  %1175 = vrot.lane.b32.xlu0 %v194, 32
  %v1176 = vpop.permute.xlu0 %1175
  %1177 = vrot.lane.b32.xlu0 %v195, 32
  %v1178 = vpop.permute.xlu0 %1177
  %1179 = vrot.lane.b32.xlu0 %v196, 32
  %v1180 = vpop.permute.xlu0 %1179
  %v1185 = vsel %vm213, %v1168, 0
  %1187 = vmatprep.subr.mxu0 0.0
  %1188 = vmatpush1.msra.mxu0 0.0
  %1189 = vmatprep.subr.mxu0 0.0
  %1190 = vmatpush1.msra.mxu0 0.0
  %1191 = vmatprep.subr.mxu0 0.0
  %1192 = vmatpush1.msra.mxu0 0.0
  %1193 = vmatprep.subr.mxu0 0.0
  %1194 = vmatpush1.msra.mxu0 0.0
  %1195 = vmatprep.subr.mxu0 0.0
  %1196 = vmatpush1.msra.mxu0 0.0
  %1197 = vmatprep.subr.mxu0 0.0
  %1198 = vmatpush1.msra.mxu0 0.0
  %1199 = vmatprep.subr.mxu0 0.0
  %1200 = vmatpush1.msra.mxu0 0.0
  %1201 = vmatprep.subr.mxu0 0.0
  %1202 = vmatpush1.msra.mxu0 0.0
  %1203 = vmatprep.subr.mxu0 0.0
  %1204 = vmatpush1.msra.mxu0 0.0
  %1205 = vmatprep.subr.mxu0 0.0
  %1206 = vmatpush1.msra.mxu0 0.0
  %1207 = vmatprep.subr.mxu0 0.0
  %1208 = vmatpush1.msra.mxu0 0.0
  %1209 = vmatprep.subr.mxu0 0.0
  %1210 = vmatpush1.msra.mxu0 0.0
  %1211 = vmatprep.subr.mxu0 0.0
  %1212 = vmatpush1.msra.mxu0 %v1180
  %1213 = vmatprep.subr.mxu0 0.0
  %1214 = vmatpush1.msra.mxu0 %v1178
  %1215 = vmatprep.subr.mxu0 0.0
  %1216 = vmatpush1.msra.mxu0 %v1176
  %1217 = vmatprep.subr.mxu0 0.0
  %1218 = vmatpush1.msra.mxu0 %v1174
  %1219 = vmatprep.subr.mxu0 0.0
  %1220 = vmatpush2.msra.mxu0 0.0
  %1221 = vmatprep.subr.mxu0 0.0
  %1222 = vmatpush2.msra.mxu0 0.0
  %1223 = vmatprep.subr.mxu0 0.0
  %1224 = vmatpush2.msra.mxu0 0.0
  %1225 = vmatprep.subr.mxu0 0.0
  %1226 = vmatpush2.msra.mxu0 0.0
  %1227 = vmatprep.subr.mxu0 0.0
  %1228 = vmatpush2.msra.mxu0 0.0
  %1229 = vmatprep.subr.mxu0 0.0
  %1230 = vmatpush2.msra.mxu0 0.0
  %1231 = vmatprep.subr.mxu0 0.0
  %1232 = vmatpush2.msra.mxu0 0.0
  %1233 = vmatprep.subr.mxu0 0.0
  %1234 = vmatpush2.msra.mxu0 0.0
  %1235 = vmatprep.subr.mxu0 0.0
  %1236 = vmatpush2.msra.mxu0 0.0
  %1237 = vmatprep.subr.mxu0 0.0
  %1238 = vmatpush2.msra.mxu0 0.0
  %1239 = vmatprep.subr.mxu0 0.0
  %1240 = vmatpush2.msra.mxu0 0.0
  %1241 = vmatprep.subr.mxu0 0.0
  %1242 = vmatpush2.msra.mxu0 0.0
  %1243 = vmatprep.subr.mxu0 0.0
  %1244 = vmatpush2.msra.mxu0 0.0
  %1245 = vmatprep.subr.mxu0 0.0
  %1246 = vmatpush2.msra.mxu0 0.0
  %1247 = vmatprep.subr.mxu0 0.0
  %1248 = vmatpush2.msra.mxu0 0.0
  %1249 = vmatprep.subr.mxu0 0.0
  %1250 = vmatpush2.msra.mxu0 0.0
  %1251 = vmatprep.mubr.f32.mxu0 0.0
  %1252 = vmatmul.mubr.f32.gmra.mxu0 %v1185
  %v1253 = vpop.f32.mrf.mxu0
  %v1254 = vadd.f32 %v294, %v1253
  %v1255 = vpop.f32.mrf.mxu0
  %1256 = vdwg.mxu0
  %v1257 = vxor.u32 %v1254, 2147483648
  %v1258 = vmul.f32 %v1257, 1.442695
  %v1259 = vpow.pop %v1258
  %v1260 = vadd.f32 %v1259, 1.0
  %v1261 = vrcp.pop %v1260
  %v1262 = vmul.f32 1.0, %v1261
  %vm1263 = vcmask 31744
  %1264 = vst.msk [vmem:[%s3] sm:$0xff] %vm1263, %v1262
  // Predicated region
  $region14: #{_gru_identifier_forward.1} parent=0 // pred_check
    _
  $region15: #{_gru_identifier_forward.1} parent=0 // pred_check_branch
    %1266 = sbr.rel (0) target = $region17
  $region16: #{_gru_identifier_forward.1} parent=0 // pred_region
    _
  $region17: #{_gru_identifier_forward.1} parent=0 // pred_fallthru
    _
  // Predicated region
  $region18: #{_gru_identifier_forward.1} parent=0 // pred_check
    _
  $region19: #{_gru_identifier_forward.1} parent=0 // pred_check_branch
    %1268 = sbr.rel (0) target = $region21
  $region20: #{_gru_identifier_forward.1} parent=0 // pred_region
    _
  $region21: #{_gru_identifier_forward.1} parent=0 // pred_fallthru
    _

</llo_original>
